<compile_context>
chip_gen: v6e
topology: v6e:2x2x1
jax: 0.10.0
libtpu: 0.0.40
codegen_flags: <defaults>
</compile_context>

<pallas_src>
import numpy as np
import jax
import jax.numpy as jnp
from jax.experimental import pallas as pl
from jax.experimental.pallas import tpu as pltpu

EPS = 1e-5


def _dot_f32_via_bf16x3(a, b):
    """f32-accurate matmul from three bf16 MXU passes (hi*hi + hi*lo + lo*hi).

    The MXU has huge slack at these contraction sizes (perf review: K*Cin =
    48/96, Cout = 32/64 on a 256-wide MXU), so the two extra passes are free;
    they keep the kernel within ~1e-4 of the strict-f32 reference instead of
    the ~5e-2 error of a single bf16 pass amplified by three BatchNorm stages.
    """
    a_hi = a.astype(jnp.bfloat16)
    a_lo = (a - a_hi.astype(jnp.float32)).astype(jnp.bfloat16)
    b_hi = b.astype(jnp.bfloat16)
    b_lo = (b - b_hi.astype(jnp.float32)).astype(jnp.bfloat16)
    mm = lambda x, y: jnp.dot(x, y, preferred_element_type=jnp.float32)
    return mm(a_hi, b_hi) + mm(a_lo, b_hi) + mm(a_hi, b_lo)


def _make_kernel(B, L, layer_dims):
    """layer_dims: tuple of (K, Cin, Cout, L_valid) per conv layer."""
    M = B * L

    def kernel(x_ref, w1_ref, p1_ref, w2_ref, p2_ref, w3_ref, p3_ref,
               out_ref, s1, s2):
        w_refs = (w1_ref, w2_ref, w3_ref)
        p_refs = (p1_ref, p2_ref, p3_ref)
        dsts = (s1, s2, out_ref)      # layer 3 writes straight to the output slab

        src = x_ref
        for (K, _Cin, Cout, Lv), w_ref, p_ref, dst in zip(
                layer_dims, w_refs, p_refs, dsts):
            x = src[...]                                        # (M, Cin) f32
            R = M - K + 1
            # im2col: fuse the K taps along the lane axis -> one contraction.
            cols = jnp.concatenate([x[dk:dk + R, :] for dk in range(K)], axis=-1)
            acc = _dot_f32_via_bf16x3(cols, w_ref[...])         # (R, Cout) f32
            p = p_ref[...]                                      # (3, Cout): bias, gamma, beta
            a = jnp.maximum(acc + p[0:1, :], 0.0)               # conv bias + ReLU

            # BatchNorm1d (training mode): masked two-pass (centered) statistics
            # over the B*Lv valid rows; rows whose conv window crossed a batch
            # boundary are excluded via an in-kernel iota mask.
            lpos = jax.lax.broadcasted_iota(jnp.int32, (R, 1), 0) % L
            valid = lpos < Lv                                   # (R, 1) bool
            n = float(B * Lv)
            mean = jnp.sum(jnp.where(valid, a, 0.0), axis=0, keepdims=True) / n
            d = jnp.where(valid, a - mean, 0.0)
            var = jnp.sum(d * d, axis=0, keepdims=True) / n     # biased, as torch
            # TODO(synk): at large M, do these axis-0 (sublane/XLU) reductions as
            # a ones-row contraction on the idle MXU instead.
            scale = p[1:2, :] * jax.lax.rsqrt(var + EPS)
            shift = p[2:3, :] - mean * scale

            dst[0:R, :] = a * scale + shift                     # fused BN affine
            # Tail-only zeroing: keep the K-1 never-written rows finite for the
            # next layer's im2col (they are masked out of its statistics) and
            # keep the output slab deterministic.
            dst[R:M, :] = jnp.zeros((M - R, Cout), jnp.float32)
            src = dst

    return kernel


def protein_cnn_forward(tokens, params):
    """tokens: (B, L) int32 in [0, 26). Returns (B, L3, F3) matching torch's .view()."""
    # Embedding lookup kept as plain-XLA glue (table gather).
    x = jnp.take(params["embedding"], tokens, axis=0).astype(jnp.float32)    # (B, L, E)
    B, L, E = x.shape
    M = B * L
    x2d = jnp.reshape(x, (M, E))                                # batch folded into rows

    kern_args = [x2d]
    layer_dims = []
    Lc = L
    for i in (1, 2, 3):
        w = params[f"w{i}"]                                     # (K, Cin, Cout) f32
        K, Cin, Cout = w.shape
        Lc = Lc - K + 1
        layer_dims.append((K, Cin, Cout, Lc))
        kern_args.append(jnp.reshape(w, (K * Cin, Cout)))       # fused-tap weight (f32)
        # Packed per-layer vectors: rows = conv bias, BN gamma, BN beta.
        kern_args.append(jnp.stack([params[f"b{i}_vec"],
                                    params[f"g{i}_vec"],
                                    params[f"beta{i}_vec"]], axis=0))
    L3 = Lc
    C1, C2, F3 = (d[2] for d in layer_dims)

    # Explicit VMEM budget: resident slabs + transient im2col / stats temporaries
    # (~3x a layer input), 2x headroom, clamped to fit every generation (v7x has
    # 64 MiB physical VMEM per TensorCore).
    est = 4 * M * (E + C1 + C2 + F3
                   + 3 * max(k * c for k, c, _, _ in layer_dims)
                   + 4 * max(C1, C2, F3))
    vmem_limit = int(min(60 * 2**20, max(32 * 2**20, 2 * est)))

    vmem = pl.BlockSpec(memory_space=pltpu.MemorySpace.VMEM)
    y2d = pl.pallas_call(
        _make_kernel(B, L, tuple(layer_dims)),
        out_shape=jax.ShapeDtypeStruct((M, F3), jnp.float32),   # channels-last slab
        in_specs=[vmem] * len(kern_args),
        out_specs=vmem,
        scratch_shapes=[pltpu.VMEM((M, C1), jnp.float32),
                        pltpu.VMEM((M, C2), jnp.float32)],
        compiler_params=pltpu.CompilerParams(vmem_limit_bytes=vmem_limit),
    )(*kern_args)                                               # (B*L, F3)

    # Channels-first permutation + torch's .view(B, L3, -1), done as cheap XLA
    # ops on the small final tensor (lane-dense kernel writeback per review).
    y = jnp.reshape(y2d, (B, L, F3))[:, :L3, :]                 # keep valid rows
    cf = jnp.transpose(y, (0, 2, 1))                            # (B, F3, L3) torch buffer
    return jnp.reshape(cf, (B, L3, F3))                         # torch .view()


def init_params(key, embedding_dim, num_filters, kernel_size):
    keys = jax.random.split(key, 13)
    emb = 0.1 * jax.random.normal(keys[0], (26, embedding_dim), jnp.float32)
    emb = emb.at[0].set(0.0)                                    # padding_idx=0
    params = {"embedding": emb}
    in_ch = [embedding_dim] + list(num_filters)
    for i in range(3):
        cin, cout, k = in_ch[i], in_ch[i + 1], kernel_size[i]
        w_oik = jax.random.normal(keys[1 + 4 * i], (cout, cin, k), jnp.float32)
        w_oik = w_oik / np.sqrt(cin * k)
        params[f"w{i+1}_oik"] = w_oik                           # torch layout (Cout, Cin, K)
        params[f"w{i+1}"] = jnp.transpose(w_oik, (2, 1, 0))     # kernel layout (K, Cin, Cout)
        params[f"b{i+1}_vec"] = 0.05 * jax.random.normal(keys[2 + 4 * i], (cout,), jnp.float32)
        params[f"g{i+1}_vec"] = 1.0 + 0.1 * jax.random.normal(keys[3 + 4 * i], (cout,), jnp.float32)
        params[f"beta{i+1}_vec"] = 0.1 * jax.random.normal(keys[4 + 4 * i], (cout,), jnp.float32)
    return params


def ref_forward(tokens, params):
    """Pure-JAX NCW reference mirroring the PyTorch forward in strict f32."""
    x = jnp.take(params["embedding"], tokens, axis=0)           # (B, L, E)
    x = jnp.transpose(x, (0, 2, 1))                             # (B, E, L)

    def layer(x, w_oik, b, g, bt):
        y = jax.lax.conv_general_dilated(
            x, w_oik, window_strides=(1,), padding="VALID",
            dimension_numbers=("NCH", "OIH", "NCH"),
            precision=jax.lax.Precision.HIGHEST)
        y = y + b[None, :, None]
        y = jnp.maximum(y, 0.0)
        mean = jnp.mean(y, axis=(0, 2), keepdims=True)
        var = jnp.mean((y - mean) ** 2, axis=(0, 2), keepdims=True)
        return g[None, :, None] * (y - mean) * jax.lax.rsqrt(var + EPS) + bt[None, :, None]

    for i in (1, 2, 3):
        x = layer(x, params[f"w{i}_oik"], params[f"b{i}_vec"],
                  params[f"g{i}_vec"], params[f"beta{i}_vec"])
    B, _, L3 = x.shape
    return jnp.reshape(x, (B, L3, -1))                          # torch .view()


if __name__ == "__main__":
    B, L = 2, 32
    embedding_dim = 16
    num_filters = [32, 32, 64]
    kernel_size = [3, 3, 3]

    key = jax.random.PRNGKey(0)
    kp, kt = jax.random.split(key)
    params = init_params(kp, embedding_dim, num_filters, kernel_size)
    tokens = jax.random.randint(kt, (B, L), 0, 26, dtype=jnp.int32)

    out = jax.block_until_ready(protein_cnn_forward(tokens, params))
    ref = jax.block_until_ready(ref_forward(tokens, params))

    assert out.shape == (B, L - sum(k - 1 for k in kernel_size), num_filters[-1])
    # The 3-pass bf16 matmuls + f32 two-pass BN stats track the strict-f32
    # (HIGHEST) reference to ~1e-4 even after three BN normalizations; 1e-2
    # leaves ample margin while structural errors (wrong windows / masks /
    # permutation) would still show up as O(1) mismatches.
    np.testing.assert_allclose(np.asarray(out), np.asarray(ref), rtol=1e-2, atol=1e-2)

    print("KERNEL_OK")
</pallas_src>

<mosaic_0001>
module attributes {stable_mosaic.version = 11 : i64} {
  func.func @kernel(%arg0: memref<64x16xf32, #tpu.memory_space<vmem>>, %arg1: memref<48x32xf32, #tpu.memory_space<vmem>>, %arg2: memref<3x32xf32, #tpu.memory_space<vmem>>, %arg3: memref<96x32xf32, #tpu.memory_space<vmem>>, %arg4: memref<3x32xf32, #tpu.memory_space<vmem>>, %arg5: memref<96x64xf32, #tpu.memory_space<vmem>>, %arg6: memref<3x64xf32, #tpu.memory_space<vmem>>, %arg7: memref<64x64xf32, #tpu.memory_space<vmem>>, %arg8: memref<64x32xf32, #tpu.memory_space<vmem>>, %arg9: memref<64x32xf32, #tpu.memory_space<vmem>>) attributes {dimension_semantics = [], scalar_prefetch = 0 : i64, scratch_operands = 2 : i64, tpu.core_type = #tpu.core_type<tc>} {
    %c0 = arith.constant 0 : index
    %c0_0 = arith.constant 0 : index
    %0 = vector.load %arg0[%c0, %c0_0] : memref<64x16xf32, #tpu.memory_space<vmem>>, vector<64x16xf32>
    %1 = vector.extract_strided_slice %0 {offsets = [0, 0], sizes = [62, 16], strides = [1, 1]} : vector<64x16xf32> to vector<62x16xf32>
    %2 = vector.extract_strided_slice %0 {offsets = [1, 0], sizes = [62, 16], strides = [1, 1]} : vector<64x16xf32> to vector<62x16xf32>
    %3 = vector.extract_strided_slice %0 {offsets = [2, 0], sizes = [62, 16], strides = [1, 1]} : vector<64x16xf32> to vector<62x16xf32>
    %4 = tpu.concatenate %1, %2, %3 in 1 : vector<62x16xf32>, vector<62x16xf32>, vector<62x16xf32> -> vector<62x48xf32>
    %c0_1 = arith.constant 0 : index
    %c0_2 = arith.constant 0 : index
    %5 = vector.load %arg1[%c0_1, %c0_2] : memref<48x32xf32, #tpu.memory_space<vmem>>, vector<48x32xf32>
    %6 = arith.truncf %4 : vector<62x48xf32> to vector<62x48xbf16>
    %7 = arith.extf %6 : vector<62x48xbf16> to vector<62x48xf32>
    %8 = arith.subf %4, %7 : vector<62x48xf32>
    %9 = arith.truncf %8 : vector<62x48xf32> to vector<62x48xbf16>
    %10 = arith.truncf %5 : vector<48x32xf32> to vector<48x32xbf16>
    %11 = arith.extf %10 : vector<48x32xbf16> to vector<48x32xf32>
    %12 = arith.subf %5, %11 : vector<48x32xf32>
    %13 = arith.truncf %12 : vector<48x32xf32> to vector<48x32xbf16>
    %cst = arith.constant dense<0.000000e+00> : vector<62x32xf32>
    %14 = tpu.matmul %6, %10, %cst {dimension_numbers = #tpu.dot_dimension_numbers<[1], [0], [0], [1], [0, 0, 1, 1], [], []>} : vector<62x48xbf16>, vector<48x32xbf16>, vector<62x32xf32> -> vector<62x32xf32>
    %cst_3 = arith.constant dense<0.000000e+00> : vector<62x32xf32>
    %15 = tpu.matmul %9, %10, %cst_3 {dimension_numbers = #tpu.dot_dimension_numbers<[1], [0], [0], [1], [0, 0, 1, 1], [], []>} : vector<62x48xbf16>, vector<48x32xbf16>, vector<62x32xf32> -> vector<62x32xf32>
    %16 = arith.addf %14, %15 : vector<62x32xf32>
    %cst_4 = arith.constant dense<0.000000e+00> : vector<62x32xf32>
    %17 = tpu.matmul %6, %13, %cst_4 {dimension_numbers = #tpu.dot_dimension_numbers<[1], [0], [0], [1], [0, 0, 1, 1], [], []>} : vector<62x48xbf16>, vector<48x32xbf16>, vector<62x32xf32> -> vector<62x32xf32>
    %18 = arith.addf %16, %17 : vector<62x32xf32>
    %c0_5 = arith.constant 0 : index
    %c0_6 = arith.constant 0 : index
    %19 = vector.load %arg2[%c0_5, %c0_6] : memref<3x32xf32, #tpu.memory_space<vmem>>, vector<3x32xf32>
    %20 = vector.extract_strided_slice %19 {offsets = [0, 0], sizes = [1, 32], strides = [1, 1]} : vector<3x32xf32> to vector<1x32xf32>
    %21 = vector.broadcast %20 : vector<1x32xf32> to vector<62x32xf32>
    %22 = arith.addf %18, %21 : vector<62x32xf32>
    %cst_7 = arith.constant 0.000000e+00 : f32
    %23 = vector.broadcast %cst_7 : f32 to vector<62x32xf32>
    %24 = arith.maximumf %22, %23 : vector<62x32xf32>
    %25 = tpu.iota {dimensions = array<i32: 0>} : vector<62x1xi32>
    %c32_i32 = arith.constant 32 : i32
    %c0_i32 = arith.constant 0 : i32
    %26 = arith.cmpi eq, %c32_i32, %c0_i32 : i32
    %c1_i32 = arith.constant 1 : i32
    %27 = arith.select %26, %c1_i32, %c32_i32 : i32
    %28 = vector.broadcast %27 : i32 to vector<62x1xi32>
    %29 = arith.remsi %25, %28 : vector<62x1xi32>
    %c0_i32_8 = arith.constant 0 : i32
    %30 = vector.broadcast %c0_i32_8 : i32 to vector<62x1xi32>
    %31 = arith.cmpi ne, %29, %30 : vector<62x1xi32>
    %c0_i32_9 = arith.constant 0 : i32
    %32 = vector.broadcast %c0_i32_9 : i32 to vector<62x1xi32>
    %33 = arith.cmpi slt, %29, %32 : vector<62x1xi32>
    %c0_i32_10 = arith.constant 0 : i32
    %34 = arith.cmpi slt, %27, %c0_i32_10 : i32
    %35 = vector.broadcast %34 : i1 to vector<62x1xi1>
    %36 = vector.broadcast %35 : vector<62x1xi1> to vector<62x1xi1>
    %37 = arith.xori %33, %36 : vector<62x1xi1>
    %38 = arith.andi %37, %31 : vector<62x1xi1>
    %39 = vector.broadcast %27 : i32 to vector<62x1xi32>
    %40 = arith.addi %29, %39 : vector<62x1xi32>
    %41 = arith.select %38, %40, %29 : vector<62x1xi1>, vector<62x1xi32>
    %c30_i32 = arith.constant 30 : i32
    %42 = vector.broadcast %c30_i32 : i32 to vector<62x1xi32>
    %43 = arith.cmpi slt, %41, %42 : vector<62x1xi32>
    %cst_11 = arith.constant 0.000000e+00 : f32
    %44 = vector.shape_cast %43 : vector<62x1xi1> to vector<62x1xi1>
    %45 = vector.broadcast %44 : vector<62x1xi1> to vector<62x32xi1>
    %46 = vector.broadcast %cst_11 : f32 to vector<62x32xf32>
    %47 = arith.select %45, %24, %46 : vector<62x32xi1>, vector<62x32xf32>
    %cst_12 = arith.constant dense<0.000000e+00> : vector<32xf32>
    %48 = vector.multi_reduction <add>, %47, %cst_12 [0] : vector<62x32xf32> to vector<32xf32>
    %49 = vector.shape_cast %48 : vector<32xf32> to vector<1x32xf32>
    %cst_13 = arith.constant 6.000000e+01 : f32
    %50 = vector.broadcast %cst_13 : f32 to vector<1x32xf32>
    %51 = arith.divf %49, %50 : vector<1x32xf32>
    %52 = vector.broadcast %51 : vector<1x32xf32> to vector<62x32xf32>
    %53 = arith.subf %24, %52 : vector<62x32xf32>
    %cst_14 = arith.constant 0.000000e+00 : f32
    %54 = vector.shape_cast %43 : vector<62x1xi1> to vector<62x1xi1>
    %55 = vector.broadcast %54 : vector<62x1xi1> to vector<62x32xi1>
    %56 = vector.broadcast %cst_14 : f32 to vector<62x32xf32>
    %57 = arith.select %55, %53, %56 : vector<62x32xi1>, vector<62x32xf32>
    %58 = arith.mulf %57, %57 : vector<62x32xf32>
    %cst_15 = arith.constant dense<0.000000e+00> : vector<32xf32>
    %59 = vector.multi_reduction <add>, %58, %cst_15 [0] : vector<62x32xf32> to vector<32xf32>
    %60 = vector.shape_cast %59 : vector<32xf32> to vector<1x32xf32>
    %cst_16 = arith.constant 6.000000e+01 : f32
    %61 = vector.broadcast %cst_16 : f32 to vector<1x32xf32>
    %62 = arith.divf %60, %61 : vector<1x32xf32>
    %63 = vector.extract_strided_slice %19 {offsets = [1, 0], sizes = [1, 32], strides = [1, 1]} : vector<3x32xf32> to vector<1x32xf32>
    %cst_17 = arith.constant 9.99999974E-6 : f32
    %64 = vector.broadcast %cst_17 : f32 to vector<1x32xf32>
    %65 = arith.addf %62, %64 : vector<1x32xf32>
    %66 = math.rsqrt %65 : vector<1x32xf32>
    %67 = arith.mulf %63, %66 : vector<1x32xf32>
    %68 = vector.extract_strided_slice %19 {offsets = [2, 0], sizes = [1, 32], strides = [1, 1]} : vector<3x32xf32> to vector<1x32xf32>
    %69 = arith.mulf %51, %67 : vector<1x32xf32>
    %70 = arith.subf %68, %69 : vector<1x32xf32>
    %71 = vector.broadcast %67 : vector<1x32xf32> to vector<62x32xf32>
    %72 = arith.mulf %24, %71 : vector<62x32xf32>
    %73 = vector.broadcast %70 : vector<1x32xf32> to vector<62x32xf32>
    %74 = arith.addf %72, %73 : vector<62x32xf32>
    %c0_18 = arith.constant 0 : index
    %c0_19 = arith.constant 0 : index
    %75 = vector.load %arg8[%c0_18, %c0_19] : memref<64x32xf32, #tpu.memory_space<vmem>>, vector<62x32xf32>
    tpu.vector_store %arg8[%c0_18, %c0_19], %74 {strides = array<i32>} : memref<64x32xf32, #tpu.memory_space<vmem>>, vector<62x32xf32>,
    %cst_20 = arith.constant 0.000000e+00 : f32
    %76 = vector.broadcast %cst_20 : f32 to vector<2x32xf32>
    %c62 = arith.constant 62 : index
    %c0_21 = arith.constant 0 : index
    %77 = vector.load %arg8[%c62, %c0_21] : memref<64x32xf32, #tpu.memory_space<vmem>>, vector<2x32xf32>
    tpu.vector_store %arg8[%c62, %c0_21], %76 {strides = array<i32>} : memref<64x32xf32, #tpu.memory_space<vmem>>, vector<2x32xf32>,
    %c0_22 = arith.constant 0 : index
    %c0_23 = arith.constant 0 : index
    %78 = vector.load %arg8[%c0_22, %c0_23] : memref<64x32xf32, #tpu.memory_space<vmem>>, vector<64x32xf32>
    %79 = vector.extract_strided_slice %78 {offsets = [0, 0], sizes = [62, 32], strides = [1, 1]} : vector<64x32xf32> to vector<62x32xf32>
    %80 = vector.extract_strided_slice %78 {offsets = [1, 0], sizes = [62, 32], strides = [1, 1]} : vector<64x32xf32> to vector<62x32xf32>
    %81 = vector.extract_strided_slice %78 {offsets = [2, 0], sizes = [62, 32], strides = [1, 1]} : vector<64x32xf32> to vector<62x32xf32>
    %82 = tpu.concatenate %79, %80, %81 in 1 : vector<62x32xf32>, vector<62x32xf32>, vector<62x32xf32> -> vector<62x96xf32>
    %c0_24 = arith.constant 0 : index
    %c0_25 = arith.constant 0 : index
    %83 = vector.load %arg3[%c0_24, %c0_25] : memref<96x32xf32, #tpu.memory_space<vmem>>, vector<96x32xf32>
    %84 = arith.truncf %82 : vector<62x96xf32> to vector<62x96xbf16>
    %85 = arith.extf %84 : vector<62x96xbf16> to vector<62x96xf32>
    %86 = arith.subf %82, %85 : vector<62x96xf32>
    %87 = arith.truncf %86 : vector<62x96xf32> to vector<62x96xbf16>
    %88 = arith.truncf %83 : vector<96x32xf32> to vector<96x32xbf16>
    %89 = arith.extf %88 : vector<96x32xbf16> to vector<96x32xf32>
    %90 = arith.subf %83, %89 : vector<96x32xf32>
    %91 = arith.truncf %90 : vector<96x32xf32> to vector<96x32xbf16>
    %cst_26 = arith.constant dense<0.000000e+00> : vector<62x32xf32>
    %92 = tpu.matmul %84, %88, %cst_26 {dimension_numbers = #tpu.dot_dimension_numbers<[1], [0], [0], [1], [0, 0, 1, 1], [], []>} : vector<62x96xbf16>, vector<96x32xbf16>, vector<62x32xf32> -> vector<62x32xf32>
    %cst_27 = arith.constant dense<0.000000e+00> : vector<62x32xf32>
    %93 = tpu.matmul %87, %88, %cst_27 {dimension_numbers = #tpu.dot_dimension_numbers<[1], [0], [0], [1], [0, 0, 1, 1], [], []>} : vector<62x96xbf16>, vector<96x32xbf16>, vector<62x32xf32> -> vector<62x32xf32>
    %94 = arith.addf %92, %93 : vector<62x32xf32>
    %cst_28 = arith.constant dense<0.000000e+00> : vector<62x32xf32>
    %95 = tpu.matmul %84, %91, %cst_28 {dimension_numbers = #tpu.dot_dimension_numbers<[1], [0], [0], [1], [0, 0, 1, 1], [], []>} : vector<62x96xbf16>, vector<96x32xbf16>, vector<62x32xf32> -> vector<62x32xf32>
    %96 = arith.addf %94, %95 : vector<62x32xf32>
    %c0_29 = arith.constant 0 : index
    %c0_30 = arith.constant 0 : index
    %97 = vector.load %arg4[%c0_29, %c0_30] : memref<3x32xf32, #tpu.memory_space<vmem>>, vector<3x32xf32>
    %98 = vector.extract_strided_slice %97 {offsets = [0, 0], sizes = [1, 32], strides = [1, 1]} : vector<3x32xf32> to vector<1x32xf32>
    %99 = vector.broadcast %98 : vector<1x32xf32> to vector<62x32xf32>
    %100 = arith.addf %96, %99 : vector<62x32xf32>
    %cst_31 = arith.constant 0.000000e+00 : f32
    %101 = vector.broadcast %cst_31 : f32 to vector<62x32xf32>
    %102 = arith.maximumf %100, %101 : vector<62x32xf32>
    %103 = tpu.iota {dimensions = array<i32: 0>} : vector<62x1xi32>
    %c32_i32_32 = arith.constant 32 : i32
    %c0_i32_33 = arith.constant 0 : i32
    %104 = arith.cmpi eq, %c32_i32_32, %c0_i32_33 : i32
    %c1_i32_34 = arith.constant 1 : i32
    %105 = arith.select %104, %c1_i32_34, %c32_i32_32 : i32
    %106 = vector.broadcast %105 : i32 to vector<62x1xi32>
    %107 = arith.remsi %103, %106 : vector<62x1xi32>
    %c0_i32_35 = arith.constant 0 : i32
    %108 = vector.broadcast %c0_i32_35 : i32 to vector<62x1xi32>
    %109 = arith.cmpi ne, %107, %108 : vector<62x1xi32>
    %c0_i32_36 = arith.constant 0 : i32
    %110 = vector.broadcast %c0_i32_36 : i32 to vector<62x1xi32>
    %111 = arith.cmpi slt, %107, %110 : vector<62x1xi32>
    %c0_i32_37 = arith.constant 0 : i32
    %112 = arith.cmpi slt, %105, %c0_i32_37 : i32
    %113 = vector.broadcast %112 : i1 to vector<62x1xi1>
    %114 = vector.broadcast %113 : vector<62x1xi1> to vector<62x1xi1>
    %115 = arith.xori %111, %114 : vector<62x1xi1>
    %116 = arith.andi %115, %109 : vector<62x1xi1>
    %117 = vector.broadcast %105 : i32 to vector<62x1xi32>
    %118 = arith.addi %107, %117 : vector<62x1xi32>
    %119 = arith.select %116, %118, %107 : vector<62x1xi1>, vector<62x1xi32>
    %c28_i32 = arith.constant 28 : i32
    %120 = vector.broadcast %c28_i32 : i32 to vector<62x1xi32>
    %121 = arith.cmpi slt, %119, %120 : vector<62x1xi32>
    %cst_38 = arith.constant 0.000000e+00 : f32
    %122 = vector.shape_cast %121 : vector<62x1xi1> to vector<62x1xi1>
    %123 = vector.broadcast %122 : vector<62x1xi1> to vector<62x32xi1>
    %124 = vector.broadcast %cst_38 : f32 to vector<62x32xf32>
    %125 = arith.select %123, %102, %124 : vector<62x32xi1>, vector<62x32xf32>
    %cst_39 = arith.constant dense<0.000000e+00> : vector<32xf32>
    %126 = vector.multi_reduction <add>, %125, %cst_39 [0] : vector<62x32xf32> to vector<32xf32>
    %127 = vector.shape_cast %126 : vector<32xf32> to vector<1x32xf32>
    %cst_40 = arith.constant 5.600000e+01 : f32
    %128 = vector.broadcast %cst_40 : f32 to vector<1x32xf32>
    %129 = arith.divf %127, %128 : vector<1x32xf32>
    %130 = vector.broadcast %129 : vector<1x32xf32> to vector<62x32xf32>
    %131 = arith.subf %102, %130 : vector<62x32xf32>
    %cst_41 = arith.constant 0.000000e+00 : f32
    %132 = vector.shape_cast %121 : vector<62x1xi1> to vector<62x1xi1>
    %133 = vector.broadcast %132 : vector<62x1xi1> to vector<62x32xi1>
    %134 = vector.broadcast %cst_41 : f32 to vector<62x32xf32>
    %135 = arith.select %133, %131, %134 : vector<62x32xi1>, vector<62x32xf32>
    %136 = arith.mulf %135, %135 : vector<62x32xf32>
    %cst_42 = arith.constant dense<0.000000e+00> : vector<32xf32>
    %137 = vector.multi_reduction <add>, %136, %cst_42 [0] : vector<62x32xf32> to vector<32xf32>
    %138 = vector.shape_cast %137 : vector<32xf32> to vector<1x32xf32>
    %cst_43 = arith.constant 5.600000e+01 : f32
    %139 = vector.broadcast %cst_43 : f32 to vector<1x32xf32>
    %140 = arith.divf %138, %139 : vector<1x32xf32>
    %141 = vector.extract_strided_slice %97 {offsets = [1, 0], sizes = [1, 32], strides = [1, 1]} : vector<3x32xf32> to vector<1x32xf32>
    %cst_44 = arith.constant 9.99999974E-6 : f32
    %142 = vector.broadcast %cst_44 : f32 to vector<1x32xf32>
    %143 = arith.addf %140, %142 : vector<1x32xf32>
    %144 = math.rsqrt %143 : vector<1x32xf32>
    %145 = arith.mulf %141, %144 : vector<1x32xf32>
    %146 = vector.extract_strided_slice %97 {offsets = [2, 0], sizes = [1, 32], strides = [1, 1]} : vector<3x32xf32> to vector<1x32xf32>
    %147 = arith.mulf %129, %145 : vector<1x32xf32>
    %148 = arith.subf %146, %147 : vector<1x32xf32>
    %149 = vector.broadcast %145 : vector<1x32xf32> to vector<62x32xf32>
    %150 = arith.mulf %102, %149 : vector<62x32xf32>
    %151 = vector.broadcast %148 : vector<1x32xf32> to vector<62x32xf32>
    %152 = arith.addf %150, %151 : vector<62x32xf32>
    %c0_45 = arith.constant 0 : index
    %c0_46 = arith.constant 0 : index
    %153 = vector.load %arg9[%c0_45, %c0_46] : memref<64x32xf32, #tpu.memory_space<vmem>>, vector<62x32xf32>
    tpu.vector_store %arg9[%c0_45, %c0_46], %152 {strides = array<i32>} : memref<64x32xf32, #tpu.memory_space<vmem>>, vector<62x32xf32>,
    %cst_47 = arith.constant 0.000000e+00 : f32
    %154 = vector.broadcast %cst_47 : f32 to vector<2x32xf32>
    %c62_48 = arith.constant 62 : index
    %c0_49 = arith.constant 0 : index
    %155 = vector.load %arg9[%c62_48, %c0_49] : memref<64x32xf32, #tpu.memory_space<vmem>>, vector<2x32xf32>
    tpu.vector_store %arg9[%c62_48, %c0_49], %154 {strides = array<i32>} : memref<64x32xf32, #tpu.memory_space<vmem>>, vector<2x32xf32>,
    %c0_50 = arith.constant 0 : index
    %c0_51 = arith.constant 0 : index
    %156 = vector.load %arg9[%c0_50, %c0_51] : memref<64x32xf32, #tpu.memory_space<vmem>>, vector<64x32xf32>
    %157 = vector.extract_strided_slice %156 {offsets = [0, 0], sizes = [62, 32], strides = [1, 1]} : vector<64x32xf32> to vector<62x32xf32>
    %158 = vector.extract_strided_slice %156 {offsets = [1, 0], sizes = [62, 32], strides = [1, 1]} : vector<64x32xf32> to vector<62x32xf32>
    %159 = vector.extract_strided_slice %156 {offsets = [2, 0], sizes = [62, 32], strides = [1, 1]} : vector<64x32xf32> to vector<62x32xf32>
    %160 = tpu.concatenate %157, %158, %159 in 1 : vector<62x32xf32>, vector<62x32xf32>, vector<62x32xf32> -> vector<62x96xf32>
    %c0_52 = arith.constant 0 : index
    %c0_53 = arith.constant 0 : index
    %161 = vector.load %arg5[%c0_52, %c0_53] : memref<96x64xf32, #tpu.memory_space<vmem>>, vector<96x64xf32>
    %162 = arith.truncf %160 : vector<62x96xf32> to vector<62x96xbf16>
    %163 = arith.extf %162 : vector<62x96xbf16> to vector<62x96xf32>
    %164 = arith.subf %160, %163 : vector<62x96xf32>
    %165 = arith.truncf %164 : vector<62x96xf32> to vector<62x96xbf16>
    %166 = arith.truncf %161 : vector<96x64xf32> to vector<96x64xbf16>
    %167 = arith.extf %166 : vector<96x64xbf16> to vector<96x64xf32>
    %168 = arith.subf %161, %167 : vector<96x64xf32>
    %169 = arith.truncf %168 : vector<96x64xf32> to vector<96x64xbf16>
    %cst_54 = arith.constant dense<0.000000e+00> : vector<62x64xf32>
    %170 = tpu.matmul %162, %166, %cst_54 {dimension_numbers = #tpu.dot_dimension_numbers<[1], [0], [0], [1], [0, 0, 1, 1], [], []>} : vector<62x96xbf16>, vector<96x64xbf16>, vector<62x64xf32> -> vector<62x64xf32>
    %cst_55 = arith.constant dense<0.000000e+00> : vector<62x64xf32>
    %171 = tpu.matmul %165, %166, %cst_55 {dimension_numbers = #tpu.dot_dimension_numbers<[1], [0], [0], [1], [0, 0, 1, 1], [], []>} : vector<62x96xbf16>, vector<96x64xbf16>, vector<62x64xf32> -> vector<62x64xf32>
    %172 = arith.addf %170, %171 : vector<62x64xf32>
    %cst_56 = arith.constant dense<0.000000e+00> : vector<62x64xf32>
    %173 = tpu.matmul %162, %169, %cst_56 {dimension_numbers = #tpu.dot_dimension_numbers<[1], [0], [0], [1], [0, 0, 1, 1], [], []>} : vector<62x96xbf16>, vector<96x64xbf16>, vector<62x64xf32> -> vector<62x64xf32>
    %174 = arith.addf %172, %173 : vector<62x64xf32>
    %c0_57 = arith.constant 0 : index
    %c0_58 = arith.constant 0 : index
    %175 = vector.load %arg6[%c0_57, %c0_58] : memref<3x64xf32, #tpu.memory_space<vmem>>, vector<3x64xf32>
    %176 = vector.extract_strided_slice %175 {offsets = [0, 0], sizes = [1, 64], strides = [1, 1]} : vector<3x64xf32> to vector<1x64xf32>
    %177 = vector.broadcast %176 : vector<1x64xf32> to vector<62x64xf32>
    %178 = arith.addf %174, %177 : vector<62x64xf32>
    %cst_59 = arith.constant 0.000000e+00 : f32
    %179 = vector.broadcast %cst_59 : f32 to vector<62x64xf32>
    %180 = arith.maximumf %178, %179 : vector<62x64xf32>
    %181 = tpu.iota {dimensions = array<i32: 0>} : vector<62x1xi32>
    %c32_i32_60 = arith.constant 32 : i32
    %c0_i32_61 = arith.constant 0 : i32
    %182 = arith.cmpi eq, %c32_i32_60, %c0_i32_61 : i32
    %c1_i32_62 = arith.constant 1 : i32
    %183 = arith.select %182, %c1_i32_62, %c32_i32_60 : i32
    %184 = vector.broadcast %183 : i32 to vector<62x1xi32>
    %185 = arith.remsi %181, %184 : vector<62x1xi32>
    %c0_i32_63 = arith.constant 0 : i32
    %186 = vector.broadcast %c0_i32_63 : i32 to vector<62x1xi32>
    %187 = arith.cmpi ne, %185, %186 : vector<62x1xi32>
    %c0_i32_64 = arith.constant 0 : i32
    %188 = vector.broadcast %c0_i32_64 : i32 to vector<62x1xi32>
    %189 = arith.cmpi slt, %185, %188 : vector<62x1xi32>
    %c0_i32_65 = arith.constant 0 : i32
    %190 = arith.cmpi slt, %183, %c0_i32_65 : i32
    %191 = vector.broadcast %190 : i1 to vector<62x1xi1>
    %192 = vector.broadcast %191 : vector<62x1xi1> to vector<62x1xi1>
    %193 = arith.xori %189, %192 : vector<62x1xi1>
    %194 = arith.andi %193, %187 : vector<62x1xi1>
    %195 = vector.broadcast %183 : i32 to vector<62x1xi32>
    %196 = arith.addi %185, %195 : vector<62x1xi32>
    %197 = arith.select %194, %196, %185 : vector<62x1xi1>, vector<62x1xi32>
    %c26_i32 = arith.constant 26 : i32
    %198 = vector.broadcast %c26_i32 : i32 to vector<62x1xi32>
    %199 = arith.cmpi slt, %197, %198 : vector<62x1xi32>
    %cst_66 = arith.constant 0.000000e+00 : f32
    %200 = vector.shape_cast %199 : vector<62x1xi1> to vector<62x1xi1>
    %201 = vector.broadcast %200 : vector<62x1xi1> to vector<62x64xi1>
    %202 = vector.broadcast %cst_66 : f32 to vector<62x64xf32>
    %203 = arith.select %201, %180, %202 : vector<62x64xi1>, vector<62x64xf32>
    %cst_67 = arith.constant dense<0.000000e+00> : vector<64xf32>
    %204 = vector.multi_reduction <add>, %203, %cst_67 [0] : vector<62x64xf32> to vector<64xf32>
    %205 = vector.shape_cast %204 : vector<64xf32> to vector<1x64xf32>
    %cst_68 = arith.constant 5.200000e+01 : f32
    %206 = vector.broadcast %cst_68 : f32 to vector<1x64xf32>
    %207 = arith.divf %205, %206 : vector<1x64xf32>
    %208 = vector.broadcast %207 : vector<1x64xf32> to vector<62x64xf32>
    %209 = arith.subf %180, %208 : vector<62x64xf32>
    %cst_69 = arith.constant 0.000000e+00 : f32
    %210 = vector.shape_cast %199 : vector<62x1xi1> to vector<62x1xi1>
    %211 = vector.broadcast %210 : vector<62x1xi1> to vector<62x64xi1>
    %212 = vector.broadcast %cst_69 : f32 to vector<62x64xf32>
    %213 = arith.select %211, %209, %212 : vector<62x64xi1>, vector<62x64xf32>
    %214 = arith.mulf %213, %213 : vector<62x64xf32>
    %cst_70 = arith.constant dense<0.000000e+00> : vector<64xf32>
    %215 = vector.multi_reduction <add>, %214, %cst_70 [0] : vector<62x64xf32> to vector<64xf32>
    %216 = vector.shape_cast %215 : vector<64xf32> to vector<1x64xf32>
    %cst_71 = arith.constant 5.200000e+01 : f32
    %217 = vector.broadcast %cst_71 : f32 to vector<1x64xf32>
    %218 = arith.divf %216, %217 : vector<1x64xf32>
    %219 = vector.extract_strided_slice %175 {offsets = [1, 0], sizes = [1, 64], strides = [1, 1]} : vector<3x64xf32> to vector<1x64xf32>
    %cst_72 = arith.constant 9.99999974E-6 : f32
    %220 = vector.broadcast %cst_72 : f32 to vector<1x64xf32>
    %221 = arith.addf %218, %220 : vector<1x64xf32>
    %222 = math.rsqrt %221 : vector<1x64xf32>
    %223 = arith.mulf %219, %222 : vector<1x64xf32>
    %224 = vector.extract_strided_slice %175 {offsets = [2, 0], sizes = [1, 64], strides = [1, 1]} : vector<3x64xf32> to vector<1x64xf32>
    %225 = arith.mulf %207, %223 : vector<1x64xf32>
    %226 = arith.subf %224, %225 : vector<1x64xf32>
    %227 = vector.broadcast %223 : vector<1x64xf32> to vector<62x64xf32>
    %228 = arith.mulf %180, %227 : vector<62x64xf32>
    %229 = vector.broadcast %226 : vector<1x64xf32> to vector<62x64xf32>
    %230 = arith.addf %228, %229 : vector<62x64xf32>
    %c0_73 = arith.constant 0 : index
    %c0_74 = arith.constant 0 : index
    %231 = vector.load %arg7[%c0_73, %c0_74] : memref<64x64xf32, #tpu.memory_space<vmem>>, vector<62x64xf32>
    tpu.vector_store %arg7[%c0_73, %c0_74], %230 {strides = array<i32>} : memref<64x64xf32, #tpu.memory_space<vmem>>, vector<62x64xf32>,
    %cst_75 = arith.constant 0.000000e+00 : f32
    %232 = vector.broadcast %cst_75 : f32 to vector<2x64xf32>
    %c62_76 = arith.constant 62 : index
    %c0_77 = arith.constant 0 : index
    %233 = vector.load %arg7[%c62_76, %c0_77] : memref<64x64xf32, #tpu.memory_space<vmem>>, vector<2x64xf32>
    tpu.vector_store %arg7[%c62_76, %c0_77], %232 {strides = array<i32>} : memref<64x64xf32, #tpu.memory_space<vmem>>, vector<2x64xf32>,
    return
  }
}

</mosaic_0001>

<llo_original>
// kernel: tpu_custom_call.1
$region0: #{tpu_custom_call.1}
  #allocation0 [shape = 'u32[]', space=smem, size = 0x4, offset = 0x4, fixed_abs, tag = 'smem constant byte address 0x4 - core index']
  #allocation1 [shape = 'u32[144,128]{1,0:T(1,128)}', space=vmem, size = 0x12000, scoped, tag = 'internal scratch']
  #allocation2 [shape = 'f32[64,32]{1,0:T(8,128)}', space=vmem, size = 0x8000, scoped, tag = 'scratch operand']
  #allocation3 [shape = 'f32[64,32]{1,0:T(8,128)}', space=vmem, size = 0x8000, scoped, tag = 'scratch operand']
  %s0 = inlined_call_operand.vmem [shape: f32[64,16], index: 0, kind: input, shape index: {}]
  %s1 = inlined_call_operand.vmem [shape: f32[48,32], index: 1, kind: input, shape index: {}]
  %s2 = inlined_call_operand.vmem [shape: f32[3,32], index: 2, kind: input, shape index: {}]
  %s3 = inlined_call_operand.vmem [shape: f32[96,32], index: 3, kind: input, shape index: {}]
  %s4 = inlined_call_operand.vmem [shape: f32[3,32], index: 4, kind: input, shape index: {}]
  %s5 = inlined_call_operand.vmem [shape: f32[96,64], index: 5, kind: input, shape index: {}]
  %s6 = inlined_call_operand.vmem [shape: f32[3,64], index: 6, kind: input, shape index: {}]
  %s7 = inlined_call_operand.hbm [shape: f32[64,64], index: 7, kind: output, shape index: {}]
  %s8 = sld [smem:[#allocation0]]
  $region38: #{tpu_custom_call.1} parent=0
    _
  %s10 = ssub.s32 1, %s8
  %s11 = scalar_select 0, %s10, %s8
  $region1: #{tpu_custom_call.1} parent=0
    #allocation4 [shape = 'u8[32768]{0}', space=vmem, size = 0x8000, scoped, tag = 'output window, operand 0, single buffered']
    #allocation5 [shape = 's32[1]{0}', space=sflag, size = 0x4, scoped, tag = 'scoped memory for tpu_custom_call.1']
    %12 = vsyncpa [#allocation5], 0
    // Predicated region
    $region2: #{tpu_custom_call.1} parent=1 // pred_check
      _
    $region3: #{tpu_custom_call.1} parent=1 // pred_check_branch
      %14 = sbr.rel (0) target = $region5
    $region4: #{tpu_custom_call.1} parent=1 // pred_region
      _
    $region5: #{tpu_custom_call.1} parent=1 // pred_fallthru
      _
    // Predicated region
    $region6: #{tpu_custom_call.1} parent=1 // pred_check
      _
    $region7: #{tpu_custom_call.1} parent=1 // pred_check_branch
      %16 = sbr.rel (0) target = $region9
    $region8: #{tpu_custom_call.1} parent=1 // pred_region
      _
    $region9: #{tpu_custom_call.1} parent=1 // pred_fallthru
      _
    // Predicated region
    $region10: #{tpu_custom_call.1} parent=1 // pred_check
      _
    $region11: #{tpu_custom_call.1} parent=1 // pred_check_branch
      %18 = sbr.rel (0) target = $region13
    $region12: #{tpu_custom_call.1} parent=1 // pred_region
      _
    $region13: #{tpu_custom_call.1} parent=1 // pred_fallthru
      _
    // Predicated region
    $region14: #{tpu_custom_call.1} parent=1 // pred_check
      _
    $region15: #{tpu_custom_call.1} parent=1 // pred_check_branch
      %20 = sbr.rel (0) target = $region17
    $region16: #{tpu_custom_call.1} parent=1 // pred_region
      _
    $region17: #{tpu_custom_call.1} parent=1 // pred_fallthru
      _
    // Predicated region
    $region18: #{tpu_custom_call.1} parent=1 // pred_check
      _
    $region19: #{tpu_custom_call.1} parent=1 // pred_check_branch
      %22 = sbr.rel (0) target = $region21
    $region20: #{tpu_custom_call.1} parent=1 // pred_region
      _
    $region21: #{tpu_custom_call.1} parent=1 // pred_fallthru
      _
    // Predicated region
    $region22: #{tpu_custom_call.1} parent=1 // pred_check
      _
    $region23: #{tpu_custom_call.1} parent=1 // pred_check_branch
      %24 = sbr.rel (0) target = $region25
    $region24: #{tpu_custom_call.1} parent=1 // pred_region
      _
    $region25: #{tpu_custom_call.1} parent=1 // pred_fallthru
      _
    // Predicated region
    $region26: #{tpu_custom_call.1} parent=1 // pred_check
      _
    $region27: #{tpu_custom_call.1} parent=1 // pred_check_branch
      %26 = sbr.rel (0) target = $region29
    $region28: #{tpu_custom_call.1} parent=1 // pred_region
      _
    $region29: #{tpu_custom_call.1} parent=1 // pred_fallthru
      _
    %v28 = vld [vmem:[%s0] sm:$0xff]
    %v29 = vld [vmem:[%s0 + $0x8] sm:$0xff]
    %v30 = vld [vmem:[%s0 + $0x10] sm:$0xff]
    %v31 = vld [vmem:[%s0 + $0x18] sm:$0xff]
    %v32 = vld [vmem:[%s0 + $0x20] sm:$0xff]
    %v33 = vld [vmem:[%s0 + $0x28] sm:$0xff]
    %v34 = vld [vmem:[%s0 + $0x30] sm:$0xff]
    %v35 = vld [vmem:[%s0 + $0x38] sm:$0xff]
    %vm44 = vcmask 1046528
    %v45 = vrot.slane %v28, 1
    %v46 = vrot.slane %v29, 1
    %v47 = vsel %vm44, %v45, %v46
    %v48 = vrot.slane %v30, 1
    %v49 = vsel %vm44, %v46, %v48
    %v50 = vrot.slane %v31, 1
    %v51 = vsel %vm44, %v48, %v50
    %v52 = vrot.slane %v32, 1
    %v53 = vsel %vm44, %v50, %v52
    %v54 = vrot.slane %v33, 1
    %v55 = vsel %vm44, %v52, %v54
    %v56 = vrot.slane %v34, 1
    %v57 = vsel %vm44, %v54, %v56
    %v58 = vrot.slane %v35, 1
    %v59 = vsel %vm44, %v56, %v58
    %60 = vrot.lane.b32.xlu0 %v47, 16
    %v61 = vpop.permute.xlu0 %60
    %62 = vrot.lane.b32.xlu0 %v49, 16
    %v63 = vpop.permute.xlu0 %62
    %64 = vrot.lane.b32.xlu0 %v51, 16
    %v65 = vpop.permute.xlu0 %64
    %66 = vrot.lane.b32.xlu0 %v53, 16
    %v67 = vpop.permute.xlu0 %66
    %68 = vrot.lane.b32.xlu0 %v55, 16
    %v69 = vpop.permute.xlu0 %68
    %70 = vrot.lane.b32.xlu0 %v57, 16
    %v71 = vpop.permute.xlu0 %70
    %72 = vrot.lane.b32.xlu0 %v59, 16
    %v73 = vpop.permute.xlu0 %72
    %74 = vrot.lane.b32.xlu0 %v58, 16
    %v75 = vpop.permute.xlu0 %74
    %vm84 = vcmask 1045504
    %v85 = vrot.slane %v28, 2
    %v86 = vrot.slane %v29, 2
    %v87 = vsel %vm84, %v85, %v86
    %v88 = vrot.slane %v30, 2
    %v89 = vsel %vm84, %v86, %v88
    %v90 = vrot.slane %v31, 2
    %v91 = vsel %vm84, %v88, %v90
    %v92 = vrot.slane %v32, 2
    %v93 = vsel %vm84, %v90, %v92
    %v94 = vrot.slane %v33, 2
    %v95 = vsel %vm84, %v92, %v94
    %v96 = vrot.slane %v34, 2
    %v97 = vsel %vm84, %v94, %v96
    %v98 = vrot.slane %v35, 2
    %v99 = vsel %vm84, %v96, %v98
    %100 = vrot.lane.b32.xlu0 %v87, 32
    %v101 = vpop.permute.xlu0 %100
    %102 = vrot.lane.b32.xlu0 %v89, 32
    %v103 = vpop.permute.xlu0 %102
    %104 = vrot.lane.b32.xlu0 %v91, 32
    %v105 = vpop.permute.xlu0 %104
    %106 = vrot.lane.b32.xlu0 %v93, 32
    %v107 = vpop.permute.xlu0 %106
    %108 = vrot.lane.b32.xlu0 %v95, 32
    %v109 = vpop.permute.xlu0 %108
    %110 = vrot.lane.b32.xlu0 %v97, 32
    %v111 = vpop.permute.xlu0 %110
    %112 = vrot.lane.b32.xlu0 %v99, 32
    %v113 = vpop.permute.xlu0 %112
    %114 = vrot.lane.b32.xlu0 %v98, 32
    %v115 = vpop.permute.xlu0 %114
    %vm124 = vcmask 130048
    %v125 = vsel %vm124, %v28, %v61
    %v126 = vsel %vm124, %v29, %v63
    %v127 = vsel %vm124, %v30, %v65
    %v128 = vsel %vm124, %v31, %v67
    %v129 = vsel %vm124, %v32, %v69
    %v130 = vsel %vm124, %v33, %v71
    %v131 = vsel %vm124, %v34, %v73
    %v132 = vsel %vm124, %v35, %v75
    %vm133 = vcmask 261120
    %v134 = vsel %vm133, %v125, %v101
    %v135 = vsel %vm133, %v126, %v103
    %v136 = vsel %vm133, %v127, %v105
    %v137 = vsel %vm133, %v128, %v107
    %v138 = vsel %vm133, %v129, %v109
    %v139 = vsel %vm133, %v130, %v111
    %v140 = vsel %vm133, %v131, %v113
    %v141 = vsel %vm133, %v132, %v115
    %v142 = vld [vmem:[%s1] sm:$0xff]
    %v143 = vld [vmem:[%s1 + $0x8] sm:$0xff]
    %v144 = vld [vmem:[%s1 + $0x10] sm:$0xff]
    %v145 = vld [vmem:[%s1 + $0x18] sm:$0xff]
    %v146 = vld [vmem:[%s1 + $0x20] sm:$0xff]
    %v147 = vld [vmem:[%s1 + $0x28] sm:$0xff]
    %v148 = vpack.c.bf16 %v135, %v134
    %v149 = vpack.c.bf16 %v137, %v136
    %v150 = vpack.c.bf16 %v139, %v138
    %v151 = vpack.c.bf16 %v141, %v140
    %v152 = vunpack.c.l.bf16 %v148
    %v153 = vunpack.c.h.bf16 %v148
    %v154 = vunpack.c.l.bf16 %v149
    %v155 = vunpack.c.h.bf16 %v149
    %v156 = vunpack.c.l.bf16 %v150
    %v157 = vunpack.c.h.bf16 %v150
    %v158 = vunpack.c.l.bf16 %v151
    %v159 = vunpack.c.h.bf16 %v151
    %v160 = vsub.f32 %v134, %v152
    %v161 = vsub.f32 %v135, %v153
    %v162 = vsub.f32 %v136, %v154
    %v163 = vsub.f32 %v137, %v155
    %v164 = vsub.f32 %v138, %v156
    %v165 = vsub.f32 %v139, %v157
    %v166 = vsub.f32 %v140, %v158
    %v167 = vsub.f32 %v141, %v159
    %v168 = vpack.c.bf16 %v161, %v160
    %v169 = vpack.c.bf16 %v163, %v162
    %v170 = vpack.c.bf16 %v165, %v164
    %v171 = vpack.c.bf16 %v167, %v166
    %v172 = vpack.c.bf16 %v143, %v142
    %v173 = vpack.c.bf16 %v145, %v144
    %v174 = vpack.c.bf16 %v147, %v146
    %v175 = vunpack.c.l.bf16 %v172
    %v176 = vunpack.c.h.bf16 %v172
    %v177 = vunpack.c.l.bf16 %v173
    %v178 = vunpack.c.h.bf16 %v173
    %v179 = vunpack.c.l.bf16 %v174
    %v180 = vunpack.c.h.bf16 %v174
    %v181 = vsub.f32 %v142, %v175
    %v182 = vsub.f32 %v143, %v176
    %v183 = vsub.f32 %v144, %v177
    %v184 = vsub.f32 %v145, %v178
    %v185 = vsub.f32 %v146, %v179
    %v186 = vsub.f32 %v147, %v180
    %v187 = vpack.c.bf16 %v182, %v181
    %v188 = vpack.c.bf16 %v184, %v183
    %v189 = vpack.c.bf16 %v186, %v185
    %vm190 = vcmask 392192
    %v192 = vsel %vm190, %v168, 0
    %v195 = vsel %vm190, %v169, 0
    %v198 = vsel %vm190, %v170, 0
    %v201 = vsel %vm190, %v171, 0
    %203 = vmatprep.subr.bf16.mxu0 0
    %204 = vmatpush1.bf16.msra.mxu0 0
    %205 = vmatprep.subr.bf16.mxu0 0
    %206 = vmatpush1.bf16.msra.mxu0 0
    %207 = vmatprep.subr.bf16.mxu0 0
    %208 = vmatpush1.bf16.msra.mxu0 0
    %209 = vmatprep.subr.bf16.mxu0 0
    %210 = vmatpush1.bf16.msra.mxu0 0
    %211 = vmatprep.subr.bf16.mxu0 0
    %212 = vmatpush1.bf16.msra.mxu0 0
    %213 = vmatprep.subr.bf16.mxu0 0
    %214 = vmatpush1.bf16.msra.mxu0 %v174
    %215 = vmatprep.subr.bf16.mxu0 0
    %216 = vmatpush1.bf16.msra.mxu0 %v173
    %217 = vmatprep.subr.bf16.mxu0 0
    %218 = vmatpush1.bf16.msra.mxu0 %v172
    %219 = vmatprep.subr.bf16.mxu0 0
    %220 = vmatpush2.bf16.msra.mxu0 0
    %221 = vmatprep.subr.bf16.mxu0 0
    %222 = vmatpush2.bf16.msra.mxu0 0
    %223 = vmatprep.subr.bf16.mxu0 0
    %224 = vmatpush2.bf16.msra.mxu0 0
    %225 = vmatprep.subr.bf16.mxu0 0
    %226 = vmatpush2.bf16.msra.mxu0 0
    %227 = vmatprep.subr.bf16.mxu0 0
    %228 = vmatpush2.bf16.msra.mxu0 0
    %229 = vmatprep.subr.bf16.mxu0 0
    %230 = vmatpush2.bf16.msra.mxu0 0
    %231 = vmatprep.subr.bf16.mxu0 0
    %232 = vmatpush2.bf16.msra.mxu0 0
    %233 = vmatprep.subr.bf16.mxu0 0
    %234 = vmatpush2.bf16.msra.mxu0 0
    %235 = vmatprep.mubr.bf16.mxu0 0
    %236 = vmatmul.mubr.bf16.gmra.mxu0 %v192
    %v237 = vpop.f32.mrf.mxu0
    %v238 = vadd.f32 0.0, %v237
    %v239 = vpop.f32.mrf.mxu0
    %v240 = vpop.f32.mrf.mxu0
    %v241 = vadd.f32 0.0, %v240
    %v242 = vpop.f32.mrf.mxu0
    %243 = vmatprep.mubr.bf16.mxu0 0
    %244 = vmatmul.mubr.bf16.gmra.mxu0 %v195
    %v245 = vpop.f32.mrf.mxu0
    %v246 = vadd.f32 0.0, %v245
    %v247 = vpop.f32.mrf.mxu0
    %v248 = vpop.f32.mrf.mxu0
    %v249 = vadd.f32 0.0, %v248
    %v250 = vpop.f32.mrf.mxu0
    %251 = vmatprep.mubr.bf16.mxu0 0
    %252 = vmatmul.mubr.bf16.gmra.mxu0 %v198
    %v253 = vpop.f32.mrf.mxu0
    %v254 = vadd.f32 0.0, %v253
    %v255 = vpop.f32.mrf.mxu0
    %v256 = vpop.f32.mrf.mxu0
    %v257 = vadd.f32 0.0, %v256
    %v258 = vpop.f32.mrf.mxu0
    %259 = vmatprep.mubr.bf16.mxu0 0
    %260 = vmatmul.mubr.bf16.gmra.mxu0 %v201
    %v261 = vpop.f32.mrf.mxu0
    %v262 = vadd.f32 0.0, %v261
    %v263 = vpop.f32.mrf.mxu0
    %v264 = vpop.f32.mrf.mxu0
    %v265 = vadd.f32 0.0, %v264
    %v266 = vpop.f32.mrf.mxu0
    %267 = vdwg.mxu0
    %v269 = vsel %vm190, %v148, 0
    %v272 = vsel %vm190, %v149, 0
    %v275 = vsel %vm190, %v150, 0
    %v278 = vsel %vm190, %v151, 0
    %280 = vmatprep.subr.bf16.mxu0 0
    %281 = vmatpush1.bf16.msra.mxu0 0
    %282 = vmatprep.subr.bf16.mxu0 0
    %283 = vmatpush1.bf16.msra.mxu0 0
    %284 = vmatprep.subr.bf16.mxu0 0
    %285 = vmatpush1.bf16.msra.mxu0 0
    %286 = vmatprep.subr.bf16.mxu0 0
    %287 = vmatpush1.bf16.msra.mxu0 0
    %288 = vmatprep.subr.bf16.mxu0 0
    %289 = vmatpush1.bf16.msra.mxu0 0
    %290 = vmatprep.subr.bf16.mxu0 0
    %291 = vmatpush1.bf16.msra.mxu0 %v174
    %292 = vmatprep.subr.bf16.mxu0 0
    %293 = vmatpush1.bf16.msra.mxu0 %v173
    %294 = vmatprep.subr.bf16.mxu0 0
    %295 = vmatpush1.bf16.msra.mxu0 %v172
    %296 = vmatprep.subr.bf16.mxu0 0
    %297 = vmatpush2.bf16.msra.mxu0 0
    %298 = vmatprep.subr.bf16.mxu0 0
    %299 = vmatpush2.bf16.msra.mxu0 0
    %300 = vmatprep.subr.bf16.mxu0 0
    %301 = vmatpush2.bf16.msra.mxu0 0
    %302 = vmatprep.subr.bf16.mxu0 0
    %303 = vmatpush2.bf16.msra.mxu0 0
    %304 = vmatprep.subr.bf16.mxu0 0
    %305 = vmatpush2.bf16.msra.mxu0 0
    %306 = vmatprep.subr.bf16.mxu0 0
    %307 = vmatpush2.bf16.msra.mxu0 0
    %308 = vmatprep.subr.bf16.mxu0 0
    %309 = vmatpush2.bf16.msra.mxu0 0
    %310 = vmatprep.subr.bf16.mxu0 0
    %311 = vmatpush2.bf16.msra.mxu0 0
    %312 = vmatprep.mubr.bf16.mxu0 0
    %313 = vmatmul.mubr.bf16.gmra.mxu0 %v269
    %v314 = vpop.f32.mrf.mxu0
    %v315 = vadd.f32 %v238, %v314
    %v316 = vpop.f32.mrf.mxu0
    %v317 = vpop.f32.mrf.mxu0
    %v318 = vadd.f32 %v241, %v317
    %v319 = vpop.f32.mrf.mxu0
    %320 = vmatprep.mubr.bf16.mxu0 0
    %321 = vmatmul.mubr.bf16.gmra.mxu0 %v272
    %v322 = vpop.f32.mrf.mxu0
    %v323 = vadd.f32 %v246, %v322
    %v324 = vpop.f32.mrf.mxu0
    %v325 = vpop.f32.mrf.mxu0
    %v326 = vadd.f32 %v249, %v325
    %v327 = vpop.f32.mrf.mxu0
    %328 = vmatprep.mubr.bf16.mxu0 0
    %329 = vmatmul.mubr.bf16.gmra.mxu0 %v275
    %v330 = vpop.f32.mrf.mxu0
    %v331 = vadd.f32 %v254, %v330
    %v332 = vpop.f32.mrf.mxu0
    %v333 = vpop.f32.mrf.mxu0
    %v334 = vadd.f32 %v257, %v333
    %v335 = vpop.f32.mrf.mxu0
    %336 = vmatprep.mubr.bf16.mxu0 0
    %337 = vmatmul.mubr.bf16.gmra.mxu0 %v278
    %v338 = vpop.f32.mrf.mxu0
    %v339 = vadd.f32 %v262, %v338
    %v340 = vpop.f32.mrf.mxu0
    %v341 = vpop.f32.mrf.mxu0
    %v342 = vadd.f32 %v265, %v341
    %v343 = vpop.f32.mrf.mxu0
    %344 = vdwg.mxu0
    %345 = vmatprep.subr.bf16.mxu0 0
    %346 = vmatpush1.bf16.msra.mxu0 0
    %347 = vmatprep.subr.bf16.mxu0 0
    %348 = vmatpush1.bf16.msra.mxu0 0
    %349 = vmatprep.subr.bf16.mxu0 0
    %350 = vmatpush1.bf16.msra.mxu0 0
    %351 = vmatprep.subr.bf16.mxu0 0
    %352 = vmatpush1.bf16.msra.mxu0 0
    %353 = vmatprep.subr.bf16.mxu0 0
    %354 = vmatpush1.bf16.msra.mxu0 0
    %355 = vmatprep.subr.bf16.mxu0 0
    %356 = vmatpush1.bf16.msra.mxu0 %v189
    %357 = vmatprep.subr.bf16.mxu0 0
    %358 = vmatpush1.bf16.msra.mxu0 %v188
    %359 = vmatprep.subr.bf16.mxu0 0
    %360 = vmatpush1.bf16.msra.mxu0 %v187
    %361 = vmatprep.subr.bf16.mxu0 0
    %362 = vmatpush2.bf16.msra.mxu0 0
    %363 = vmatprep.subr.bf16.mxu0 0
    %364 = vmatpush2.bf16.msra.mxu0 0
    %365 = vmatprep.subr.bf16.mxu0 0
    %366 = vmatpush2.bf16.msra.mxu0 0
    %367 = vmatprep.subr.bf16.mxu0 0
    %368 = vmatpush2.bf16.msra.mxu0 0
    %369 = vmatprep.subr.bf16.mxu0 0
    %370 = vmatpush2.bf16.msra.mxu0 0
    %371 = vmatprep.subr.bf16.mxu0 0
    %372 = vmatpush2.bf16.msra.mxu0 0
    %373 = vmatprep.subr.bf16.mxu0 0
    %374 = vmatpush2.bf16.msra.mxu0 0
    %375 = vmatprep.subr.bf16.mxu0 0
    %376 = vmatpush2.bf16.msra.mxu0 0
    %377 = vmatprep.mubr.bf16.mxu0 0
    %378 = vmatmul.mubr.bf16.gmra.mxu0 %v269
    %v379 = vpop.f32.mrf.mxu0
    %v380 = vadd.f32 0.0, %v379
    %v381 = vpop.f32.mrf.mxu0
    %v382 = vpop.f32.mrf.mxu0
    %v383 = vadd.f32 0.0, %v382
    %v384 = vpop.f32.mrf.mxu0
    %385 = vmatprep.mubr.bf16.mxu0 0
    %386 = vmatmul.mubr.bf16.gmra.mxu0 %v272
    %v387 = vpop.f32.mrf.mxu0
    %v388 = vadd.f32 0.0, %v387
    %v389 = vpop.f32.mrf.mxu0
    %v390 = vpop.f32.mrf.mxu0
    %v391 = vadd.f32 0.0, %v390
    %v392 = vpop.f32.mrf.mxu0
    %393 = vmatprep.mubr.bf16.mxu0 0
    %394 = vmatmul.mubr.bf16.gmra.mxu0 %v275
    %v395 = vpop.f32.mrf.mxu0
    %v396 = vadd.f32 0.0, %v395
    %v397 = vpop.f32.mrf.mxu0
    %v398 = vpop.f32.mrf.mxu0
    %v399 = vadd.f32 0.0, %v398
    %v400 = vpop.f32.mrf.mxu0
    %401 = vmatprep.mubr.bf16.mxu0 0
    %402 = vmatmul.mubr.bf16.gmra.mxu0 %v278
    %v403 = vpop.f32.mrf.mxu0
    %v404 = vadd.f32 0.0, %v403
    %v405 = vpop.f32.mrf.mxu0
    %v406 = vpop.f32.mrf.mxu0
    %v407 = vadd.f32 0.0, %v406
    %v408 = vpop.f32.mrf.mxu0
    %409 = vdwg.mxu0
    %v410 = vadd.f32 %v315, %v380
    %v411 = vadd.f32 %v318, %v383
    %v412 = vadd.f32 %v323, %v388
    %v413 = vadd.f32 %v326, %v391
    %v414 = vadd.f32 %v331, %v396
    %v415 = vadd.f32 %v334, %v399
    %v416 = vadd.f32 %v339, %v404
    %v417 = vadd.f32 %v342, %v407
    %v418 = vld [vmem:[%s2] sm:$0x7]
    %v419 = vlaneseq
    %v420 = vshrl.u32 %v419, 7
    %v421 = vsub.s32 0, %v420
    %v422 = vrot.slane %v418, %v421
    %v423 = vadd.f32 %v410, %v422
    %v424 = vadd.f32 %v411, %v422
    %v425 = vadd.f32 %v412, %v422
    %v426 = vadd.f32 %v413, %v422
    %v427 = vadd.f32 %v414, %v422
    %v428 = vadd.f32 %v415, %v422
    %v429 = vadd.f32 %v416, %v422
    %v430 = vadd.f32 %v417, %v422
    %v431 = vmax.f32 %v423, 0.0
    %v432 = vmax.f32 %v424, 0.0
    %v433 = vmax.f32 %v425, 0.0
    %v434 = vmax.f32 %v426, 0.0
    %v435 = vmax.f32 %v427, 0.0
    %v436 = vmax.f32 %v428, 0.0
    %v437 = vmax.f32 %v429, 0.0
    %v438 = vmax.f32 %v430, 0.0
    %v439 = vlaneseq
    %v440 = vshrl.u32 %v439, 7
    %v441 = vadd.s32 %v440, 8
    %v442 = vadd.s32 %v440, 16
    %v443 = vadd.s32 %v440, 24
    %v444 = vadd.s32 %v440, 32
    %v445 = vadd.s32 %v440, 40
    %v446 = vadd.s32 %v440, 48
    %v447 = vadd.s32 %v440, 56
    %vm448 = vcmp.lt.s32.totalorder %v440, 0
    %v449 = vsub.s32 0, %v440
    %v450 = vsel %vm448, %v449, %v440
    %v451 = vshrl.u32 %v450, 5
    %v452 = vand.u32 %v450, 31
    %v453 = vsub.s32 0, %v452
    %v454 = vsel %vm448, %v453, %v452
    %vm455 = vcmp.lt.s32.totalorder %v441, 0
    %v456 = vsub.s32 0, %v441
    %v457 = vsel %vm455, %v456, %v441
    %v458 = vshrl.u32 %v457, 5
    %v459 = vand.u32 %v457, 31
    %v460 = vsub.s32 0, %v459
    %v461 = vsel %vm455, %v460, %v459
    %vm462 = vcmp.lt.s32.totalorder %v442, 0
    %v463 = vsub.s32 0, %v442
    %v464 = vsel %vm462, %v463, %v442
    %v465 = vshrl.u32 %v464, 5
    %v466 = vand.u32 %v464, 31
    %v467 = vsub.s32 0, %v466
    %v468 = vsel %vm462, %v467, %v466
    %vm469 = vcmp.lt.s32.totalorder %v443, 0
    %v470 = vsub.s32 0, %v443
    %v471 = vsel %vm469, %v470, %v443
    %v472 = vshrl.u32 %v471, 5
    %v473 = vand.u32 %v471, 31
    %v474 = vsub.s32 0, %v473
    %v475 = vsel %vm469, %v474, %v473
    %vm476 = vcmp.lt.s32.totalorder %v444, 0
    %v477 = vsub.s32 0, %v444
    %v478 = vsel %vm476, %v477, %v444
    %v479 = vshrl.u32 %v478, 5
    %v480 = vand.u32 %v478, 31
    %v481 = vsub.s32 0, %v480
    %v482 = vsel %vm476, %v481, %v480
    %vm483 = vcmp.lt.s32.totalorder %v445, 0
    %v484 = vsub.s32 0, %v445
    %v485 = vsel %vm483, %v484, %v445
    %v486 = vshrl.u32 %v485, 5
    %v487 = vand.u32 %v485, 31
    %v488 = vsub.s32 0, %v487
    %v489 = vsel %vm483, %v488, %v487
    %vm490 = vcmp.lt.s32.totalorder %v446, 0
    %v491 = vsub.s32 0, %v446
    %v492 = vsel %vm490, %v491, %v446
    %v493 = vshrl.u32 %v492, 5
    %v494 = vand.u32 %v492, 31
    %v495 = vsub.s32 0, %v494
    %v496 = vsel %vm490, %v495, %v494
    %vm497 = vcmp.lt.s32.totalorder %v447, 0
    %v498 = vsub.s32 0, %v447
    %v499 = vsel %vm497, %v498, %v447
    %v500 = vshrl.u32 %v499, 5
    %v501 = vand.u32 %v499, 31
    %v502 = vsub.s32 0, %v501
    %v503 = vsel %vm497, %v502, %v501
    %vm504 = vcmp.ne.s32.totalorder %v454, 0
    %vm505 = vcmp.ne.s32.totalorder %v461, 0
    %vm506 = vcmp.ne.s32.totalorder %v468, 0
    %vm507 = vcmp.ne.s32.totalorder %v475, 0
    %vm508 = vcmp.ne.s32.totalorder %v482, 0
    %vm509 = vcmp.ne.s32.totalorder %v489, 0
    %vm510 = vcmp.ne.s32.totalorder %v496, 0
    %vm511 = vcmp.ne.s32.totalorder %v503, 0
    %vm512 = vcmp.lt.s32.totalorder %v454, 0
    %vm513 = vcmp.lt.s32.totalorder %v461, 0
    %vm514 = vcmp.lt.s32.totalorder %v468, 0
    %vm515 = vcmp.lt.s32.totalorder %v475, 0
    %vm516 = vcmp.lt.s32.totalorder %v482, 0
    %vm517 = vcmp.lt.s32.totalorder %v489, 0
    %vm518 = vcmp.lt.s32.totalorder %v496, 0
    %vm519 = vcmp.lt.s32.totalorder %v503, 0
    %vm520 = vmand %vm512, %vm504
    %vm521 = vmand %vm513, %vm505
    %vm522 = vmand %vm514, %vm506
    %vm523 = vmand %vm515, %vm507
    %vm524 = vmand %vm516, %vm508
    %vm525 = vmand %vm517, %vm509
    %vm526 = vmand %vm518, %vm510
    %vm527 = vmand %vm519, %vm511
    %v528 = vadd.s32 %v454, 32
    %v529 = vadd.s32 %v461, 32
    %v530 = vadd.s32 %v468, 32
    %v531 = vadd.s32 %v475, 32
    %v532 = vadd.s32 %v482, 32
    %v533 = vadd.s32 %v489, 32
    %v534 = vadd.s32 %v496, 32
    %v535 = vadd.s32 %v503, 32
    %v536 = vsel %vm520, %v528, %v454
    %v537 = vsel %vm521, %v529, %v461
    %v538 = vsel %vm522, %v530, %v468
    %v539 = vsel %vm523, %v531, %v475
    %v540 = vsel %vm524, %v532, %v482
    %v541 = vsel %vm525, %v533, %v489
    %v542 = vsel %vm526, %v534, %v496
    %v543 = vsel %vm527, %v535, %v503
    %vm544 = vcmp.lt.s32.totalorder %v536, 30
    %vm545 = vcmp.lt.s32.totalorder %v537, 30
    %vm546 = vcmp.lt.s32.totalorder %v538, 30
    %vm547 = vcmp.lt.s32.totalorder %v539, 30
    %vm548 = vcmp.lt.s32.totalorder %v540, 30
    %vm549 = vcmp.lt.s32.totalorder %v541, 30
    %vm550 = vcmp.lt.s32.totalorder %v542, 30
    %vm551 = vcmp.lt.s32.totalorder %v543, 30
    %v552 = vsel %vm544, 1, 0
    %v553 = vsel %vm545, 1, 0
    %v554 = vsel %vm546, 1, 0
    %v555 = vsel %vm547, 1, 0
    %v556 = vsel %vm548, 1, 0
    %v557 = vsel %vm549, 1, 0
    %v558 = vsel %vm550, 1, 0
    %v559 = vsel %vm551, 1, 0
    %vm560 = vcmp.eq.s32.totalorder %v552, 1
    %vm561 = vcmp.eq.s32.totalorder %v553, 1
    %vm562 = vcmp.eq.s32.totalorder %v554, 1
    %vm563 = vcmp.eq.s32.totalorder %v555, 1
    %vm564 = vcmp.eq.s32.totalorder %v556, 1
    %vm565 = vcmp.eq.s32.totalorder %v557, 1
    %vm566 = vcmp.eq.s32.totalorder %v558, 1
    %vm567 = vcmp.eq.s32.totalorder %v559, 1
    %v568 = vsel %vm560, %v431, 0.0
    %v569 = vsel %vm561, %v432, 0.0
    %v570 = vsel %vm562, %v433, 0.0
    %v571 = vsel %vm563, %v434, 0.0
    %v572 = vsel %vm564, %v435, 0.0
    %v573 = vsel %vm565, %v436, 0.0
    %v574 = vsel %vm566, %v437, 0.0
    %v575 = vsel %vm567, %v438, 0.0
    %v576 = vsel %vm133, %v568, 0.0
    %v577 = vsel %vm133, %v569, 0.0
    %v578 = vadd.f32 %v576, %v577
    %v579 = vsel %vm133, %v570, 0.0
    %v580 = vadd.f32 %v578, %v579
    %v581 = vsel %vm133, %v571, 0.0
    %v582 = vadd.f32 %v580, %v581
    %v583 = vsel %vm133, %v572, 0.0
    %v584 = vadd.f32 %v582, %v583
    %v585 = vsel %vm133, %v573, 0.0
    %v586 = vadd.f32 %v584, %v585
    %v587 = vsel %vm133, %v574, 0.0
    %v588 = vadd.f32 %v586, %v587
    %vm589 = vcmask 259072
    %v590 = vsel %vm589, %v575, 0.0
    %v591 = vadd.f32 %v588, %v590
    %v592 = vrot.slane %v591, 4
    %v593 = vadd.f32 %v591, %v592
    %v594 = vrot.slane %v593, 2
    %v595 = vadd.f32 %v593, %v594
    %v596 = vrot.slane %v595, 1
    %v597 = vadd.f32 %v595, %v596
    %v598 = vrcp.pop 60.0
    %v599 = vmul.f32 %v597, %v598
    %v600 = vsub.f32 %v431, %v599
    %v601 = vsub.f32 %v432, %v599
    %v602 = vsub.f32 %v433, %v599
    %v603 = vsub.f32 %v434, %v599
    %v604 = vsub.f32 %v435, %v599
    %v605 = vsub.f32 %v436, %v599
    %v606 = vsub.f32 %v437, %v599
    %v607 = vsub.f32 %v438, %v599
    %v608 = vsel %vm560, %v600, 0.0
    %v609 = vsel %vm561, %v601, 0.0
    %v610 = vsel %vm562, %v602, 0.0
    %v611 = vsel %vm563, %v603, 0.0
    %v612 = vsel %vm564, %v604, 0.0
    %v613 = vsel %vm565, %v605, 0.0
    %v614 = vsel %vm566, %v606, 0.0
    %v615 = vsel %vm567, %v607, 0.0
    %v616 = vmul.f32 %v608, %v608
    %v617 = vmul.f32 %v609, %v609
    %v618 = vmul.f32 %v610, %v610
    %v619 = vmul.f32 %v611, %v611
    %v620 = vmul.f32 %v612, %v612
    %v621 = vmul.f32 %v613, %v613
    %v622 = vmul.f32 %v614, %v614
    %v623 = vmul.f32 %v615, %v615
    %v624 = vsel %vm133, %v616, 0.0
    %v625 = vsel %vm133, %v617, 0.0
    %v626 = vadd.f32 %v624, %v625
    %v627 = vsel %vm133, %v618, 0.0
    %v628 = vadd.f32 %v626, %v627
    %v629 = vsel %vm133, %v619, 0.0
    %v630 = vadd.f32 %v628, %v629
    %v631 = vsel %vm133, %v620, 0.0
    %v632 = vadd.f32 %v630, %v631
    %v633 = vsel %vm133, %v621, 0.0
    %v634 = vadd.f32 %v632, %v633
    %v635 = vsel %vm133, %v622, 0.0
    %v636 = vadd.f32 %v634, %v635
    %v637 = vsel %vm589, %v623, 0.0
    %v638 = vadd.f32 %v636, %v637
    %v639 = vrot.slane %v638, 4
    %v640 = vadd.f32 %v638, %v639
    %v641 = vrot.slane %v640, 2
    %v642 = vadd.f32 %v640, %v641
    %v643 = vrot.slane %v642, 1
    %v644 = vadd.f32 %v642, %v643
    %v645 = vmul.f32 %v644, %v598
    %v646 = vadd.f32 %v645, 1e-05
    %v647 = vrsqrt.pop %v646
    %v648 = vmul.f32 %v418, %v647
    %v649 = vmul.f32 %v599, %v648
    %v651 = vrot.slane %v649, 7
    %v653 = vsub.f32 %v418, %v651
    %v654 = vlaneseq
    %v655 = vshrl.u32 %v654, 7
    %v656 = vsub.s32 1, %v655
    %v657 = vrot.slane %v648, %v656
    %v658 = vmul.f32 %v431, %v657
    %v659 = vmul.f32 %v432, %v657
    %v660 = vmul.f32 %v433, %v657
    %v661 = vmul.f32 %v434, %v657
    %v662 = vmul.f32 %v435, %v657
    %v663 = vmul.f32 %v436, %v657
    %v664 = vmul.f32 %v437, %v657
    %v665 = vmul.f32 %v438, %v657
    %v666 = vlaneseq
    %v667 = vshrl.u32 %v666, 7
    %v668 = vsub.s32 2, %v667
    %v669 = vrot.slane %v653, %v668
    %v670 = vadd.f32 %v658, %v669
    %v671 = vadd.f32 %v659, %v669
    %v672 = vadd.f32 %v660, %v669
    %v673 = vadd.f32 %v661, %v669
    %v674 = vadd.f32 %v662, %v669
    %v675 = vadd.f32 %v663, %v669
    %v676 = vadd.f32 %v664, %v669
    %v677 = vadd.f32 %v665, %v669
    %678 = vst.msk [vmem:[#allocation2] sm:$0xff] %vm133, %v670
    %679 = vst.msk [vmem:[#allocation2 + $0x8] sm:$0xff] %vm133, %v671
    %680 = vst.msk [vmem:[#allocation2 + $0x10] sm:$0xff] %vm133, %v672
    %681 = vst.msk [vmem:[#allocation2 + $0x18] sm:$0xff] %vm133, %v673
    %682 = vst.msk [vmem:[#allocation2 + $0x20] sm:$0xff] %vm133, %v674
    %683 = vst.msk [vmem:[#allocation2 + $0x28] sm:$0xff] %vm133, %v675
    %684 = vst.msk [vmem:[#allocation2 + $0x30] sm:$0xff] %vm133, %v676
    %685 = vst.msk [vmem:[#allocation2 + $0x38] sm:$0x3f] %vm589, %v677
    %vm686 = vcmask 254976
    %687 = vst.msk [vmem:[#allocation2 + $0x3e] sm:$0x3] %vm686, 0.0
    %v688 = vld [vmem:[#allocation2] sm:$0xff]
    %v689 = vld [vmem:[#allocation2 + $0x8] sm:$0xff]
    %v690 = vld [vmem:[#allocation2 + $0x10] sm:$0xff]
    %v691 = vld [vmem:[#allocation2 + $0x18] sm:$0xff]
    %v692 = vld [vmem:[#allocation2 + $0x20] sm:$0xff]
    %v693 = vld [vmem:[#allocation2 + $0x28] sm:$0xff]
    %v694 = vld [vmem:[#allocation2 + $0x30] sm:$0xff]
    %v695 = vld [vmem:[#allocation2 + $0x38] sm:$0xff]
    %v704 = vrot.slane %v688, 1
    %v705 = vrot.slane %v689, 1
    %v706 = vsel %vm44, %v704, %v705
    %v707 = vrot.slane %v690, 1
    %v708 = vsel %vm44, %v705, %v707
    %v709 = vrot.slane %v691, 1
    %v710 = vsel %vm44, %v707, %v709
    %v711 = vrot.slane %v692, 1
    %v712 = vsel %vm44, %v709, %v711
    %v713 = vrot.slane %v693, 1
    %v714 = vsel %vm44, %v711, %v713
    %v715 = vrot.slane %v694, 1
    %v716 = vsel %vm44, %v713, %v715
    %v717 = vrot.slane %v695, 1
    %v718 = vsel %vm44, %v715, %v717
    %719 = vrot.lane.b32.xlu0 %v706, 32
    %v720 = vpop.permute.xlu0 %719
    %721 = vrot.lane.b32.xlu0 %v708, 32
    %v722 = vpop.permute.xlu0 %721
    %723 = vrot.lane.b32.xlu0 %v710, 32
    %v724 = vpop.permute.xlu0 %723
    %725 = vrot.lane.b32.xlu0 %v712, 32
    %v726 = vpop.permute.xlu0 %725
    %727 = vrot.lane.b32.xlu0 %v714, 32
    %v728 = vpop.permute.xlu0 %727
    %729 = vrot.lane.b32.xlu0 %v716, 32
    %v730 = vpop.permute.xlu0 %729
    %731 = vrot.lane.b32.xlu0 %v718, 32
    %v732 = vpop.permute.xlu0 %731
    %733 = vrot.lane.b32.xlu0 %v717, 32
    %v734 = vpop.permute.xlu0 %733
    %v743 = vrot.slane %v688, 2
    %v744 = vrot.slane %v689, 2
    %v745 = vsel %vm84, %v743, %v744
    %v746 = vrot.slane %v690, 2
    %v747 = vsel %vm84, %v744, %v746
    %v748 = vrot.slane %v691, 2
    %v749 = vsel %vm84, %v746, %v748
    %v750 = vrot.slane %v692, 2
    %v751 = vsel %vm84, %v748, %v750
    %v752 = vrot.slane %v693, 2
    %v753 = vsel %vm84, %v750, %v752
    %v754 = vrot.slane %v694, 2
    %v755 = vsel %vm84, %v752, %v754
    %v756 = vrot.slane %v695, 2
    %v757 = vsel %vm84, %v754, %v756
    %758 = vrot.lane.b32.xlu0 %v745, 64
    %v759 = vpop.permute.xlu0 %758
    %760 = vrot.lane.b32.xlu0 %v747, 64
    %v761 = vpop.permute.xlu0 %760
    %762 = vrot.lane.b32.xlu0 %v749, 64
    %v763 = vpop.permute.xlu0 %762
    %764 = vrot.lane.b32.xlu0 %v751, 64
    %v765 = vpop.permute.xlu0 %764
    %766 = vrot.lane.b32.xlu0 %v753, 64
    %v767 = vpop.permute.xlu0 %766
    %768 = vrot.lane.b32.xlu0 %v755, 64
    %v769 = vpop.permute.xlu0 %768
    %770 = vrot.lane.b32.xlu0 %v757, 64
    %v771 = vpop.permute.xlu0 %770
    %772 = vrot.lane.b32.xlu0 %v756, 64
    %v773 = vpop.permute.xlu0 %772
    %v782 = vsel %vm133, %v688, %v720
    %v783 = vsel %vm133, %v689, %v722
    %v784 = vsel %vm133, %v690, %v724
    %v785 = vsel %vm133, %v691, %v726
    %v786 = vsel %vm133, %v692, %v728
    %v787 = vsel %vm133, %v693, %v730
    %v788 = vsel %vm133, %v694, %v732
    %v789 = vsel %vm133, %v695, %v734
    %vm790 = vcmask 523264
    %v791 = vsel %vm790, %v782, %v759
    %v792 = vsel %vm790, %v783, %v761
    %v793 = vsel %vm790, %v784, %v763
    %v794 = vsel %vm790, %v785, %v765
    %v795 = vsel %vm790, %v786, %v767
    %v796 = vsel %vm790, %v787, %v769
    %v797 = vsel %vm790, %v788, %v771
    %v798 = vsel %vm790, %v789, %v773
    %v799 = vld [vmem:[%s3] sm:$0xff]
    %v800 = vld [vmem:[%s3 + $0x8] sm:$0xff]
    %v801 = vld [vmem:[%s3 + $0x10] sm:$0xff]
    %v802 = vld [vmem:[%s3 + $0x18] sm:$0xff]
    %v803 = vld [vmem:[%s3 + $0x20] sm:$0xff]
    %v804 = vld [vmem:[%s3 + $0x28] sm:$0xff]
    %v805 = vld [vmem:[%s3 + $0x30] sm:$0xff]
    %v806 = vld [vmem:[%s3 + $0x38] sm:$0xff]
    %v807 = vld [vmem:[%s3 + $0x40] sm:$0xff]
    %v808 = vld [vmem:[%s3 + $0x48] sm:$0xff]
    %v809 = vld [vmem:[%s3 + $0x50] sm:$0xff]
    %v810 = vld [vmem:[%s3 + $0x58] sm:$0xff]
    %v811 = vpack.c.bf16 %v792, %v791
    %v812 = vpack.c.bf16 %v794, %v793
    %v813 = vpack.c.bf16 %v796, %v795
    %v814 = vpack.c.bf16 %v798, %v797
    %v815 = vunpack.c.l.bf16 %v811
    %v816 = vunpack.c.h.bf16 %v811
    %v817 = vunpack.c.l.bf16 %v812
    %v818 = vunpack.c.h.bf16 %v812
    %v819 = vunpack.c.l.bf16 %v813
    %v820 = vunpack.c.h.bf16 %v813
    %v821 = vunpack.c.l.bf16 %v814
    %v822 = vunpack.c.h.bf16 %v814
    %v823 = vsub.f32 %v791, %v815
    %v824 = vsub.f32 %v792, %v816
    %v825 = vsub.f32 %v793, %v817
    %v826 = vsub.f32 %v794, %v818
    %v827 = vsub.f32 %v795, %v819
    %v828 = vsub.f32 %v796, %v820
    %v829 = vsub.f32 %v797, %v821
    %v830 = vsub.f32 %v798, %v822
    %v831 = vpack.c.bf16 %v824, %v823
    %v832 = vpack.c.bf16 %v826, %v825
    %v833 = vpack.c.bf16 %v828, %v827
    %v834 = vpack.c.bf16 %v830, %v829
    %v835 = vpack.c.bf16 %v800, %v799
    %v836 = vpack.c.bf16 %v802, %v801
    %v837 = vpack.c.bf16 %v804, %v803
    %v838 = vpack.c.bf16 %v806, %v805
    %v839 = vpack.c.bf16 %v808, %v807
    %v840 = vpack.c.bf16 %v810, %v809
    %v841 = vunpack.c.l.bf16 %v835
    %v842 = vunpack.c.h.bf16 %v835
    %v843 = vunpack.c.l.bf16 %v836
    %v844 = vunpack.c.h.bf16 %v836
    %v845 = vunpack.c.l.bf16 %v837
    %v846 = vunpack.c.h.bf16 %v837
    %v847 = vunpack.c.l.bf16 %v838
    %v848 = vunpack.c.h.bf16 %v838
    %v849 = vunpack.c.l.bf16 %v839
    %v850 = vunpack.c.h.bf16 %v839
    %v851 = vunpack.c.l.bf16 %v840
    %v852 = vunpack.c.h.bf16 %v840
    %v853 = vsub.f32 %v799, %v841
    %v854 = vsub.f32 %v800, %v842
    %v855 = vsub.f32 %v801, %v843
    %v856 = vsub.f32 %v802, %v844
    %v857 = vsub.f32 %v803, %v845
    %v858 = vsub.f32 %v804, %v846
    %v859 = vsub.f32 %v805, %v847
    %v860 = vsub.f32 %v806, %v848
    %v861 = vsub.f32 %v807, %v849
    %v862 = vsub.f32 %v808, %v850
    %v863 = vsub.f32 %v809, %v851
    %v864 = vsub.f32 %v810, %v852
    %v865 = vpack.c.bf16 %v854, %v853
    %v866 = vpack.c.bf16 %v856, %v855
    %v867 = vpack.c.bf16 %v858, %v857
    %v868 = vpack.c.bf16 %v860, %v859
    %v869 = vpack.c.bf16 %v862, %v861
    %v870 = vpack.c.bf16 %v864, %v863
    %vm871 = vcmask 785408
    %v873 = vsel %vm871, %v831, 0
    %v876 = vsel %vm871, %v832, 0
    %v879 = vsel %vm871, %v833, 0
    %v882 = vsel %vm871, %v834, 0
    %884 = vmatprep.subr.bf16.mxu0 0
    %885 = vmatpush1.bf16.msra.mxu0 0
    %886 = vmatprep.subr.bf16.mxu0 0
    %887 = vmatpush1.bf16.msra.mxu0 0
    %888 = vmatprep.subr.bf16.mxu0 0
    %889 = vmatpush1.bf16.msra.mxu0 %v840
    %890 = vmatprep.subr.bf16.mxu0 0
    %891 = vmatpush1.bf16.msra.mxu0 %v839
    %892 = vmatprep.subr.bf16.mxu0 0
    %893 = vmatpush1.bf16.msra.mxu0 %v838
    %894 = vmatprep.subr.bf16.mxu0 0
    %895 = vmatpush1.bf16.msra.mxu0 %v837
    %896 = vmatprep.subr.bf16.mxu0 0
    %897 = vmatpush1.bf16.msra.mxu0 %v836
    %898 = vmatprep.subr.bf16.mxu0 0
    %899 = vmatpush1.bf16.msra.mxu0 %v835
    %900 = vmatprep.subr.bf16.mxu0 0
    %901 = vmatpush2.bf16.msra.mxu0 0
    %902 = vmatprep.subr.bf16.mxu0 0
    %903 = vmatpush2.bf16.msra.mxu0 0
    %904 = vmatprep.subr.bf16.mxu0 0
    %905 = vmatpush2.bf16.msra.mxu0 0
    %906 = vmatprep.subr.bf16.mxu0 0
    %907 = vmatpush2.bf16.msra.mxu0 0
    %908 = vmatprep.subr.bf16.mxu0 0
    %909 = vmatpush2.bf16.msra.mxu0 0
    %910 = vmatprep.subr.bf16.mxu0 0
    %911 = vmatpush2.bf16.msra.mxu0 0
    %912 = vmatprep.subr.bf16.mxu0 0
    %913 = vmatpush2.bf16.msra.mxu0 0
    %914 = vmatprep.subr.bf16.mxu0 0
    %915 = vmatpush2.bf16.msra.mxu0 0
    %916 = vmatprep.mubr.bf16.mxu0 0
    %917 = vmatmul.mubr.bf16.gmra.mxu0 %v873
    %v918 = vpop.f32.mrf.mxu0
    %v919 = vadd.f32 0.0, %v918
    %v920 = vpop.f32.mrf.mxu0
    %v921 = vpop.f32.mrf.mxu0
    %v922 = vadd.f32 0.0, %v921
    %v923 = vpop.f32.mrf.mxu0
    %924 = vmatprep.mubr.bf16.mxu0 0
    %925 = vmatmul.mubr.bf16.gmra.mxu0 %v876
    %v926 = vpop.f32.mrf.mxu0
    %v927 = vadd.f32 0.0, %v926
    %v928 = vpop.f32.mrf.mxu0
    %v929 = vpop.f32.mrf.mxu0
    %v930 = vadd.f32 0.0, %v929
    %v931 = vpop.f32.mrf.mxu0
    %932 = vmatprep.mubr.bf16.mxu0 0
    %933 = vmatmul.mubr.bf16.gmra.mxu0 %v879
    %v934 = vpop.f32.mrf.mxu0
    %v935 = vadd.f32 0.0, %v934
    %v936 = vpop.f32.mrf.mxu0
    %v937 = vpop.f32.mrf.mxu0
    %v938 = vadd.f32 0.0, %v937
    %v939 = vpop.f32.mrf.mxu0
    %940 = vmatprep.mubr.bf16.mxu0 0
    %941 = vmatmul.mubr.bf16.gmra.mxu0 %v882
    %v942 = vpop.f32.mrf.mxu0
    %v943 = vadd.f32 0.0, %v942
    %v944 = vpop.f32.mrf.mxu0
    %v945 = vpop.f32.mrf.mxu0
    %v946 = vadd.f32 0.0, %v945
    %v947 = vpop.f32.mrf.mxu0
    %948 = vdwg.mxu0
    %v950 = vsel %vm871, %v811, 0
    %v953 = vsel %vm871, %v812, 0
    %v956 = vsel %vm871, %v813, 0
    %v959 = vsel %vm871, %v814, 0
    %961 = vmatprep.subr.bf16.mxu0 0
    %962 = vmatpush1.bf16.msra.mxu0 0
    %963 = vmatprep.subr.bf16.mxu0 0
    %964 = vmatpush1.bf16.msra.mxu0 0
    %965 = vmatprep.subr.bf16.mxu0 0
    %966 = vmatpush1.bf16.msra.mxu0 %v840
    %967 = vmatprep.subr.bf16.mxu0 0
    %968 = vmatpush1.bf16.msra.mxu0 %v839
    %969 = vmatprep.subr.bf16.mxu0 0
    %970 = vmatpush1.bf16.msra.mxu0 %v838
    %971 = vmatprep.subr.bf16.mxu0 0
    %972 = vmatpush1.bf16.msra.mxu0 %v837
    %973 = vmatprep.subr.bf16.mxu0 0
    %974 = vmatpush1.bf16.msra.mxu0 %v836
    %975 = vmatprep.subr.bf16.mxu0 0
    %976 = vmatpush1.bf16.msra.mxu0 %v835
    %977 = vmatprep.subr.bf16.mxu0 0
    %978 = vmatpush2.bf16.msra.mxu0 0
    %979 = vmatprep.subr.bf16.mxu0 0
    %980 = vmatpush2.bf16.msra.mxu0 0
    %981 = vmatprep.subr.bf16.mxu0 0
    %982 = vmatpush2.bf16.msra.mxu0 0
    %983 = vmatprep.subr.bf16.mxu0 0
    %984 = vmatpush2.bf16.msra.mxu0 0
    %985 = vmatprep.subr.bf16.mxu0 0
    %986 = vmatpush2.bf16.msra.mxu0 0
    %987 = vmatprep.subr.bf16.mxu0 0
    %988 = vmatpush2.bf16.msra.mxu0 0
    %989 = vmatprep.subr.bf16.mxu0 0
    %990 = vmatpush2.bf16.msra.mxu0 0
    %991 = vmatprep.subr.bf16.mxu0 0
    %992 = vmatpush2.bf16.msra.mxu0 0
    %993 = vmatprep.mubr.bf16.mxu0 0
    %994 = vmatmul.mubr.bf16.gmra.mxu0 %v950
    %v995 = vpop.f32.mrf.mxu0
    %v996 = vadd.f32 %v919, %v995
    %v997 = vpop.f32.mrf.mxu0
    %v998 = vpop.f32.mrf.mxu0
    %v999 = vadd.f32 %v922, %v998
    %v1000 = vpop.f32.mrf.mxu0
    %1001 = vmatprep.mubr.bf16.mxu0 0
    %1002 = vmatmul.mubr.bf16.gmra.mxu0 %v953
    %v1003 = vpop.f32.mrf.mxu0
    %v1004 = vadd.f32 %v927, %v1003
    %v1005 = vpop.f32.mrf.mxu0
    %v1006 = vpop.f32.mrf.mxu0
    %v1007 = vadd.f32 %v930, %v1006
    %v1008 = vpop.f32.mrf.mxu0
    %1009 = vmatprep.mubr.bf16.mxu0 0
    %1010 = vmatmul.mubr.bf16.gmra.mxu0 %v956
    %v1011 = vpop.f32.mrf.mxu0
    %v1012 = vadd.f32 %v935, %v1011
    %v1013 = vpop.f32.mrf.mxu0
    %v1014 = vpop.f32.mrf.mxu0
    %v1015 = vadd.f32 %v938, %v1014
    %v1016 = vpop.f32.mrf.mxu0
    %1017 = vmatprep.mubr.bf16.mxu0 0
    %1018 = vmatmul.mubr.bf16.gmra.mxu0 %v959
    %v1019 = vpop.f32.mrf.mxu0
    %v1020 = vadd.f32 %v943, %v1019
    %v1021 = vpop.f32.mrf.mxu0
    %v1022 = vpop.f32.mrf.mxu0
    %v1023 = vadd.f32 %v946, %v1022
    %v1024 = vpop.f32.mrf.mxu0
    %1025 = vdwg.mxu0
    %1026 = vmatprep.subr.bf16.mxu0 0
    %1027 = vmatpush1.bf16.msra.mxu0 0
    %1028 = vmatprep.subr.bf16.mxu0 0
    %1029 = vmatpush1.bf16.msra.mxu0 0
    %1030 = vmatprep.subr.bf16.mxu0 0
    %1031 = vmatpush1.bf16.msra.mxu0 %v870
    %1032 = vmatprep.subr.bf16.mxu0 0
    %1033 = vmatpush1.bf16.msra.mxu0 %v869
    %1034 = vmatprep.subr.bf16.mxu0 0
    %1035 = vmatpush1.bf16.msra.mxu0 %v868
    %1036 = vmatprep.subr.bf16.mxu0 0
    %1037 = vmatpush1.bf16.msra.mxu0 %v867
    %1038 = vmatprep.subr.bf16.mxu0 0
    %1039 = vmatpush1.bf16.msra.mxu0 %v866
    %1040 = vmatprep.subr.bf16.mxu0 0
    %1041 = vmatpush1.bf16.msra.mxu0 %v865
    %1042 = vmatprep.subr.bf16.mxu0 0
    %1043 = vmatpush2.bf16.msra.mxu0 0
    %1044 = vmatprep.subr.bf16.mxu0 0
    %1045 = vmatpush2.bf16.msra.mxu0 0
    %1046 = vmatprep.subr.bf16.mxu0 0
    %1047 = vmatpush2.bf16.msra.mxu0 0
    %1048 = vmatprep.subr.bf16.mxu0 0
    %1049 = vmatpush2.bf16.msra.mxu0 0
    %1050 = vmatprep.subr.bf16.mxu0 0
    %1051 = vmatpush2.bf16.msra.mxu0 0
    %1052 = vmatprep.subr.bf16.mxu0 0
    %1053 = vmatpush2.bf16.msra.mxu0 0
    %1054 = vmatprep.subr.bf16.mxu0 0
    %1055 = vmatpush2.bf16.msra.mxu0 0
    %1056 = vmatprep.subr.bf16.mxu0 0
    %1057 = vmatpush2.bf16.msra.mxu0 0
    %1058 = vmatprep.mubr.bf16.mxu0 0
    %1059 = vmatmul.mubr.bf16.gmra.mxu0 %v950
    %v1060 = vpop.f32.mrf.mxu0
    %v1061 = vadd.f32 0.0, %v1060
    %v1062 = vpop.f32.mrf.mxu0
    %v1063 = vpop.f32.mrf.mxu0
    %v1064 = vadd.f32 0.0, %v1063
    %v1065 = vpop.f32.mrf.mxu0
    %1066 = vmatprep.mubr.bf16.mxu0 0
    %1067 = vmatmul.mubr.bf16.gmra.mxu0 %v953
    %v1068 = vpop.f32.mrf.mxu0
    %v1069 = vadd.f32 0.0, %v1068
    %v1070 = vpop.f32.mrf.mxu0
    %v1071 = vpop.f32.mrf.mxu0
    %v1072 = vadd.f32 0.0, %v1071
    %v1073 = vpop.f32.mrf.mxu0
    %1074 = vmatprep.mubr.bf16.mxu0 0
    %1075 = vmatmul.mubr.bf16.gmra.mxu0 %v956
    %v1076 = vpop.f32.mrf.mxu0
    %v1077 = vadd.f32 0.0, %v1076
    %v1078 = vpop.f32.mrf.mxu0
    %v1079 = vpop.f32.mrf.mxu0
    %v1080 = vadd.f32 0.0, %v1079
    %v1081 = vpop.f32.mrf.mxu0
    %1082 = vmatprep.mubr.bf16.mxu0 0
    %1083 = vmatmul.mubr.bf16.gmra.mxu0 %v959
    %v1084 = vpop.f32.mrf.mxu0
    %v1085 = vadd.f32 0.0, %v1084
    %v1086 = vpop.f32.mrf.mxu0
    %v1087 = vpop.f32.mrf.mxu0
    %v1088 = vadd.f32 0.0, %v1087
    %v1089 = vpop.f32.mrf.mxu0
    %1090 = vdwg.mxu0
    %v1091 = vadd.f32 %v996, %v1061
    %v1092 = vadd.f32 %v999, %v1064
    %v1093 = vadd.f32 %v1004, %v1069
    %v1094 = vadd.f32 %v1007, %v1072
    %v1095 = vadd.f32 %v1012, %v1077
    %v1096 = vadd.f32 %v1015, %v1080
    %v1097 = vadd.f32 %v1020, %v1085
    %v1098 = vadd.f32 %v1023, %v1088
    %v1099 = vld [vmem:[%s4] sm:$0x7]
    %v1100 = vlaneseq
    %v1101 = vshrl.u32 %v1100, 7
    %v1102 = vsub.s32 0, %v1101
    %v1103 = vrot.slane %v1099, %v1102
    %v1104 = vadd.f32 %v1091, %v1103
    %v1105 = vadd.f32 %v1092, %v1103
    %v1106 = vadd.f32 %v1093, %v1103
    %v1107 = vadd.f32 %v1094, %v1103
    %v1108 = vadd.f32 %v1095, %v1103
    %v1109 = vadd.f32 %v1096, %v1103
    %v1110 = vadd.f32 %v1097, %v1103
    %v1111 = vadd.f32 %v1098, %v1103
    %v1112 = vmax.f32 %v1104, 0.0
    %v1113 = vmax.f32 %v1105, 0.0
    %v1114 = vmax.f32 %v1106, 0.0
    %v1115 = vmax.f32 %v1107, 0.0
    %v1116 = vmax.f32 %v1108, 0.0
    %v1117 = vmax.f32 %v1109, 0.0
    %v1118 = vmax.f32 %v1110, 0.0
    %v1119 = vmax.f32 %v1111, 0.0
    %vm1120 = vcmp.lt.s32.totalorder %v536, 28
    %vm1121 = vcmp.lt.s32.totalorder %v537, 28
    %vm1122 = vcmp.lt.s32.totalorder %v538, 28
    %vm1123 = vcmp.lt.s32.totalorder %v539, 28
    %vm1124 = vcmp.lt.s32.totalorder %v540, 28
    %vm1125 = vcmp.lt.s32.totalorder %v541, 28
    %vm1126 = vcmp.lt.s32.totalorder %v542, 28
    %vm1127 = vcmp.lt.s32.totalorder %v543, 28
    %v1128 = vsel %vm1120, 1, 0
    %v1129 = vsel %vm1121, 1, 0
    %v1130 = vsel %vm1122, 1, 0
    %v1131 = vsel %vm1123, 1, 0
    %v1132 = vsel %vm1124, 1, 0
    %v1133 = vsel %vm1125, 1, 0
    %v1134 = vsel %vm1126, 1, 0
    %v1135 = vsel %vm1127, 1, 0
    %vm1136 = vcmp.eq.s32.totalorder %v1128, 1
    %vm1137 = vcmp.eq.s32.totalorder %v1129, 1
    %vm1138 = vcmp.eq.s32.totalorder %v1130, 1
    %vm1139 = vcmp.eq.s32.totalorder %v1131, 1
    %vm1140 = vcmp.eq.s32.totalorder %v1132, 1
    %vm1141 = vcmp.eq.s32.totalorder %v1133, 1
    %vm1142 = vcmp.eq.s32.totalorder %v1134, 1
    %vm1143 = vcmp.eq.s32.totalorder %v1135, 1
    %v1144 = vsel %vm1136, %v1112, 0.0
    %v1145 = vsel %vm1137, %v1113, 0.0
    %v1146 = vsel %vm1138, %v1114, 0.0
    %v1147 = vsel %vm1139, %v1115, 0.0
    %v1148 = vsel %vm1140, %v1116, 0.0
    %v1149 = vsel %vm1141, %v1117, 0.0
    %v1150 = vsel %vm1142, %v1118, 0.0
    %v1151 = vsel %vm1143, %v1119, 0.0
    %v1152 = vsel %vm133, %v1144, 0.0
    %v1153 = vsel %vm133, %v1145, 0.0
    %v1154 = vadd.f32 %v1152, %v1153
    %v1155 = vsel %vm133, %v1146, 0.0
    %v1156 = vadd.f32 %v1154, %v1155
    %v1157 = vsel %vm133, %v1147, 0.0
    %v1158 = vadd.f32 %v1156, %v1157
    %v1159 = vsel %vm133, %v1148, 0.0
    %v1160 = vadd.f32 %v1158, %v1159
    %v1161 = vsel %vm133, %v1149, 0.0
    %v1162 = vadd.f32 %v1160, %v1161
    %v1163 = vsel %vm133, %v1150, 0.0
    %v1164 = vadd.f32 %v1162, %v1163
    %v1165 = vsel %vm589, %v1151, 0.0
    %v1166 = vadd.f32 %v1164, %v1165
    %v1167 = vrot.slane %v1166, 4
    %v1168 = vadd.f32 %v1166, %v1167
    %v1169 = vrot.slane %v1168, 2
    %v1170 = vadd.f32 %v1168, %v1169
    %v1171 = vrot.slane %v1170, 1
    %v1172 = vadd.f32 %v1170, %v1171
    %v1173 = vrcp.pop 56.0
    %v1174 = vmul.f32 %v1172, %v1173
    %v1175 = vsub.f32 %v1112, %v1174
    %v1176 = vsub.f32 %v1113, %v1174
    %v1177 = vsub.f32 %v1114, %v1174
    %v1178 = vsub.f32 %v1115, %v1174
    %v1179 = vsub.f32 %v1116, %v1174
    %v1180 = vsub.f32 %v1117, %v1174
    %v1181 = vsub.f32 %v1118, %v1174
    %v1182 = vsub.f32 %v1119, %v1174
    %v1183 = vsel %vm1136, %v1175, 0.0
    %v1184 = vsel %vm1137, %v1176, 0.0
    %v1185 = vsel %vm1138, %v1177, 0.0
    %v1186 = vsel %vm1139, %v1178, 0.0
    %v1187 = vsel %vm1140, %v1179, 0.0
    %v1188 = vsel %vm1141, %v1180, 0.0
    %v1189 = vsel %vm1142, %v1181, 0.0
    %v1190 = vsel %vm1143, %v1182, 0.0
    %v1191 = vmul.f32 %v1183, %v1183
    %v1192 = vmul.f32 %v1184, %v1184
    %v1193 = vmul.f32 %v1185, %v1185
    %v1194 = vmul.f32 %v1186, %v1186
    %v1195 = vmul.f32 %v1187, %v1187
    %v1196 = vmul.f32 %v1188, %v1188
    %v1197 = vmul.f32 %v1189, %v1189
    %v1198 = vmul.f32 %v1190, %v1190
    %v1199 = vsel %vm133, %v1191, 0.0
    %v1200 = vsel %vm133, %v1192, 0.0
    %v1201 = vadd.f32 %v1199, %v1200
    %v1202 = vsel %vm133, %v1193, 0.0
    %v1203 = vadd.f32 %v1201, %v1202
    %v1204 = vsel %vm133, %v1194, 0.0
    %v1205 = vadd.f32 %v1203, %v1204
    %v1206 = vsel %vm133, %v1195, 0.0
    %v1207 = vadd.f32 %v1205, %v1206
    %v1208 = vsel %vm133, %v1196, 0.0
    %v1209 = vadd.f32 %v1207, %v1208
    %v1210 = vsel %vm133, %v1197, 0.0
    %v1211 = vadd.f32 %v1209, %v1210
    %v1212 = vsel %vm589, %v1198, 0.0
    %v1213 = vadd.f32 %v1211, %v1212
    %v1214 = vrot.slane %v1213, 4
    %v1215 = vadd.f32 %v1213, %v1214
    %v1216 = vrot.slane %v1215, 2
    %v1217 = vadd.f32 %v1215, %v1216
    %v1218 = vrot.slane %v1217, 1
    %v1219 = vadd.f32 %v1217, %v1218
    %v1220 = vmul.f32 %v1219, %v1173
    %v1221 = vadd.f32 %v1220, 1e-05
    %v1222 = vrsqrt.pop %v1221
    %v1223 = vmul.f32 %v1099, %v1222
    %v1224 = vmul.f32 %v1174, %v1223
    %v1226 = vrot.slane %v1224, 7
    %v1228 = vsub.f32 %v1099, %v1226
    %v1229 = vlaneseq
    %v1230 = vshrl.u32 %v1229, 7
    %v1231 = vsub.s32 1, %v1230
    %v1232 = vrot.slane %v1223, %v1231
    %v1233 = vmul.f32 %v1112, %v1232
    %v1234 = vmul.f32 %v1113, %v1232
    %v1235 = vmul.f32 %v1114, %v1232
    %v1236 = vmul.f32 %v1115, %v1232
    %v1237 = vmul.f32 %v1116, %v1232
    %v1238 = vmul.f32 %v1117, %v1232
    %v1239 = vmul.f32 %v1118, %v1232
    %v1240 = vmul.f32 %v1119, %v1232
    %v1241 = vlaneseq
    %v1242 = vshrl.u32 %v1241, 7
    %v1243 = vsub.s32 2, %v1242
    %v1244 = vrot.slane %v1228, %v1243
    %v1245 = vadd.f32 %v1233, %v1244
    %v1246 = vadd.f32 %v1234, %v1244
    %v1247 = vadd.f32 %v1235, %v1244
    %v1248 = vadd.f32 %v1236, %v1244
    %v1249 = vadd.f32 %v1237, %v1244
    %v1250 = vadd.f32 %v1238, %v1244
    %v1251 = vadd.f32 %v1239, %v1244
    %v1252 = vadd.f32 %v1240, %v1244
    %1253 = vst.msk [vmem:[#allocation3] sm:$0xff] %vm133, %v1245
    %1254 = vst.msk [vmem:[#allocation3 + $0x8] sm:$0xff] %vm133, %v1246
    %1255 = vst.msk [vmem:[#allocation3 + $0x10] sm:$0xff] %vm133, %v1247
    %1256 = vst.msk [vmem:[#allocation3 + $0x18] sm:$0xff] %vm133, %v1248
    %1257 = vst.msk [vmem:[#allocation3 + $0x20] sm:$0xff] %vm133, %v1249
    %1258 = vst.msk [vmem:[#allocation3 + $0x28] sm:$0xff] %vm133, %v1250
    %1259 = vst.msk [vmem:[#allocation3 + $0x30] sm:$0xff] %vm133, %v1251
    %1260 = vst.msk [vmem:[#allocation3 + $0x38] sm:$0x3f] %vm589, %v1252
    %1261 = vst.msk [vmem:[#allocation3 + $0x3e] sm:$0x3] %vm686, 0.0
    %v1262 = vld [vmem:[#allocation3] sm:$0xff]
    %v1263 = vld [vmem:[#allocation3 + $0x8] sm:$0xff]
    %v1264 = vld [vmem:[#allocation3 + $0x10] sm:$0xff]
    %v1265 = vld [vmem:[#allocation3 + $0x18] sm:$0xff]
    %v1266 = vld [vmem:[#allocation3 + $0x20] sm:$0xff]
    %v1267 = vld [vmem:[#allocation3 + $0x28] sm:$0xff]
    %v1268 = vld [vmem:[#allocation3 + $0x30] sm:$0xff]
    %v1269 = vld [vmem:[#allocation3 + $0x38] sm:$0xff]
    %v1278 = vrot.slane %v1262, 1
    %v1279 = vrot.slane %v1263, 1
    %v1280 = vsel %vm44, %v1278, %v1279
    %v1281 = vrot.slane %v1264, 1
    %v1282 = vsel %vm44, %v1279, %v1281
    %v1283 = vrot.slane %v1265, 1
    %v1284 = vsel %vm44, %v1281, %v1283
    %v1285 = vrot.slane %v1266, 1
    %v1286 = vsel %vm44, %v1283, %v1285
    %v1287 = vrot.slane %v1267, 1
    %v1288 = vsel %vm44, %v1285, %v1287
    %v1289 = vrot.slane %v1268, 1
    %v1290 = vsel %vm44, %v1287, %v1289
    %v1291 = vrot.slane %v1269, 1
    %v1292 = vsel %vm44, %v1289, %v1291
    %1293 = vrot.lane.b32.xlu0 %v1280, 32
    %v1294 = vpop.permute.xlu0 %1293
    %1295 = vrot.lane.b32.xlu0 %v1282, 32
    %v1296 = vpop.permute.xlu0 %1295
    %1297 = vrot.lane.b32.xlu0 %v1284, 32
    %v1298 = vpop.permute.xlu0 %1297
    %1299 = vrot.lane.b32.xlu0 %v1286, 32
    %v1300 = vpop.permute.xlu0 %1299
    %1301 = vrot.lane.b32.xlu0 %v1288, 32
    %v1302 = vpop.permute.xlu0 %1301
    %1303 = vrot.lane.b32.xlu0 %v1290, 32
    %v1304 = vpop.permute.xlu0 %1303
    %1305 = vrot.lane.b32.xlu0 %v1292, 32
    %v1306 = vpop.permute.xlu0 %1305
    %1307 = vrot.lane.b32.xlu0 %v1291, 32
    %v1308 = vpop.permute.xlu0 %1307
    %v1317 = vrot.slane %v1262, 2
    %v1318 = vrot.slane %v1263, 2
    %v1319 = vsel %vm84, %v1317, %v1318
    %v1320 = vrot.slane %v1264, 2
    %v1321 = vsel %vm84, %v1318, %v1320
    %v1322 = vrot.slane %v1265, 2
    %v1323 = vsel %vm84, %v1320, %v1322
    %v1324 = vrot.slane %v1266, 2
    %v1325 = vsel %vm84, %v1322, %v1324
    %v1326 = vrot.slane %v1267, 2
    %v1327 = vsel %vm84, %v1324, %v1326
    %v1328 = vrot.slane %v1268, 2
    %v1329 = vsel %vm84, %v1326, %v1328
    %v1330 = vrot.slane %v1269, 2
    %v1331 = vsel %vm84, %v1328, %v1330
    %1332 = vrot.lane.b32.xlu0 %v1319, 64
    %v1333 = vpop.permute.xlu0 %1332
    %1334 = vrot.lane.b32.xlu0 %v1321, 64
    %v1335 = vpop.permute.xlu0 %1334
    %1336 = vrot.lane.b32.xlu0 %v1323, 64
    %v1337 = vpop.permute.xlu0 %1336
    %1338 = vrot.lane.b32.xlu0 %v1325, 64
    %v1339 = vpop.permute.xlu0 %1338
    %1340 = vrot.lane.b32.xlu0 %v1327, 64
    %v1341 = vpop.permute.xlu0 %1340
    %1342 = vrot.lane.b32.xlu0 %v1329, 64
    %v1343 = vpop.permute.xlu0 %1342
    %1344 = vrot.lane.b32.xlu0 %v1331, 64
    %v1345 = vpop.permute.xlu0 %1344
    %1346 = vrot.lane.b32.xlu0 %v1330, 64
    %v1347 = vpop.permute.xlu0 %1346
    %v1356 = vsel %vm133, %v1262, %v1294
    %v1357 = vsel %vm133, %v1263, %v1296
    %v1358 = vsel %vm133, %v1264, %v1298
    %v1359 = vsel %vm133, %v1265, %v1300
    %v1360 = vsel %vm133, %v1266, %v1302
    %v1361 = vsel %vm133, %v1267, %v1304
    %v1362 = vsel %vm133, %v1268, %v1306
    %v1363 = vsel %vm133, %v1269, %v1308
    %v1364 = vsel %vm790, %v1356, %v1333
    %v1365 = vsel %vm790, %v1357, %v1335
    %v1366 = vsel %vm790, %v1358, %v1337
    %v1367 = vsel %vm790, %v1359, %v1339
    %v1368 = vsel %vm790, %v1360, %v1341
    %v1369 = vsel %vm790, %v1361, %v1343
    %v1370 = vsel %vm790, %v1362, %v1345
    %v1371 = vsel %vm790, %v1363, %v1347
    %v1372 = vld [vmem:[%s5] sm:$0xff]
    %v1373 = vld [vmem:[%s5 + $0x8] sm:$0xff]
    %v1374 = vld [vmem:[%s5 + $0x10] sm:$0xff]
    %v1375 = vld [vmem:[%s5 + $0x18] sm:$0xff]
    %v1376 = vld [vmem:[%s5 + $0x20] sm:$0xff]
    %v1377 = vld [vmem:[%s5 + $0x28] sm:$0xff]
    %v1378 = vld [vmem:[%s5 + $0x30] sm:$0xff]
    %v1379 = vld [vmem:[%s5 + $0x38] sm:$0xff]
    %v1380 = vld [vmem:[%s5 + $0x40] sm:$0xff]
    %v1381 = vld [vmem:[%s5 + $0x48] sm:$0xff]
    %v1382 = vld [vmem:[%s5 + $0x50] sm:$0xff]
    %v1383 = vld [vmem:[%s5 + $0x58] sm:$0xff]
    %v1384 = vpack.c.bf16 %v1365, %v1364
    %v1385 = vpack.c.bf16 %v1367, %v1366
    %v1386 = vpack.c.bf16 %v1369, %v1368
    %v1387 = vpack.c.bf16 %v1371, %v1370
    %v1388 = vunpack.c.l.bf16 %v1384
    %v1389 = vunpack.c.h.bf16 %v1384
    %v1390 = vunpack.c.l.bf16 %v1385
    %v1391 = vunpack.c.h.bf16 %v1385
    %v1392 = vunpack.c.l.bf16 %v1386
    %v1393 = vunpack.c.h.bf16 %v1386
    %v1394 = vunpack.c.l.bf16 %v1387
    %v1395 = vunpack.c.h.bf16 %v1387
    %v1396 = vsub.f32 %v1364, %v1388
    %v1397 = vsub.f32 %v1365, %v1389
    %v1398 = vsub.f32 %v1366, %v1390
    %v1399 = vsub.f32 %v1367, %v1391
    %v1400 = vsub.f32 %v1368, %v1392
    %v1401 = vsub.f32 %v1369, %v1393
    %v1402 = vsub.f32 %v1370, %v1394
    %v1403 = vsub.f32 %v1371, %v1395
    %v1404 = vpack.c.bf16 %v1397, %v1396
    %v1405 = vpack.c.bf16 %v1399, %v1398
    %v1406 = vpack.c.bf16 %v1401, %v1400
    %v1407 = vpack.c.bf16 %v1403, %v1402
    %v1408 = vpack.c.bf16 %v1373, %v1372
    %v1409 = vpack.c.bf16 %v1375, %v1374
    %v1410 = vpack.c.bf16 %v1377, %v1376
    %v1411 = vpack.c.bf16 %v1379, %v1378
    %v1412 = vpack.c.bf16 %v1381, %v1380
    %v1413 = vpack.c.bf16 %v1383, %v1382
    %v1414 = vunpack.c.l.bf16 %v1408
    %v1415 = vunpack.c.h.bf16 %v1408
    %v1416 = vunpack.c.l.bf16 %v1409
    %v1417 = vunpack.c.h.bf16 %v1409
    %v1418 = vunpack.c.l.bf16 %v1410
    %v1419 = vunpack.c.h.bf16 %v1410
    %v1420 = vunpack.c.l.bf16 %v1411
    %v1421 = vunpack.c.h.bf16 %v1411
    %v1422 = vunpack.c.l.bf16 %v1412
    %v1423 = vunpack.c.h.bf16 %v1412
    %v1424 = vunpack.c.l.bf16 %v1413
    %v1425 = vunpack.c.h.bf16 %v1413
    %v1426 = vsub.f32 %v1372, %v1414
    %v1427 = vsub.f32 %v1373, %v1415
    %v1428 = vsub.f32 %v1374, %v1416
    %v1429 = vsub.f32 %v1375, %v1417
    %v1430 = vsub.f32 %v1376, %v1418
    %v1431 = vsub.f32 %v1377, %v1419
    %v1432 = vsub.f32 %v1378, %v1420
    %v1433 = vsub.f32 %v1379, %v1421
    %v1434 = vsub.f32 %v1380, %v1422
    %v1435 = vsub.f32 %v1381, %v1423
    %v1436 = vsub.f32 %v1382, %v1424
    %v1437 = vsub.f32 %v1383, %v1425
    %v1438 = vpack.c.bf16 %v1427, %v1426
    %v1439 = vpack.c.bf16 %v1429, %v1428
    %v1440 = vpack.c.bf16 %v1431, %v1430
    %v1441 = vpack.c.bf16 %v1433, %v1432
    %v1442 = vpack.c.bf16 %v1435, %v1434
    %v1443 = vpack.c.bf16 %v1437, %v1436
    %v1445 = vsel %vm871, %v1404, 0
    %v1448 = vsel %vm871, %v1405, 0
    %v1451 = vsel %vm871, %v1406, 0
    %v1454 = vsel %vm871, %v1407, 0
    %1456 = vmatprep.subr.bf16.mxu0 0
    %1457 = vmatpush1.bf16.msra.mxu0 0
    %1458 = vmatprep.subr.bf16.mxu0 0
    %1459 = vmatpush1.bf16.msra.mxu0 0
    %1460 = vmatprep.subr.bf16.mxu0 0
    %1461 = vmatpush1.bf16.msra.mxu0 %v1413
    %1462 = vmatprep.subr.bf16.mxu0 0
    %1463 = vmatpush1.bf16.msra.mxu0 %v1412
    %1464 = vmatprep.subr.bf16.mxu0 0
    %1465 = vmatpush1.bf16.msra.mxu0 %v1411
    %1466 = vmatprep.subr.bf16.mxu0 0
    %1467 = vmatpush1.bf16.msra.mxu0 %v1410
    %1468 = vmatprep.subr.bf16.mxu0 0
    %1469 = vmatpush1.bf16.msra.mxu0 %v1409
    %1470 = vmatprep.subr.bf16.mxu0 0
    %1471 = vmatpush1.bf16.msra.mxu0 %v1408
    %1472 = vmatprep.subr.bf16.mxu0 0
    %1473 = vmatpush2.bf16.msra.mxu0 0
    %1474 = vmatprep.subr.bf16.mxu0 0
    %1475 = vmatpush2.bf16.msra.mxu0 0
    %1476 = vmatprep.subr.bf16.mxu0 0
    %1477 = vmatpush2.bf16.msra.mxu0 0
    %1478 = vmatprep.subr.bf16.mxu0 0
    %1479 = vmatpush2.bf16.msra.mxu0 0
    %1480 = vmatprep.subr.bf16.mxu0 0
    %1481 = vmatpush2.bf16.msra.mxu0 0
    %1482 = vmatprep.subr.bf16.mxu0 0
    %1483 = vmatpush2.bf16.msra.mxu0 0
    %1484 = vmatprep.subr.bf16.mxu0 0
    %1485 = vmatpush2.bf16.msra.mxu0 0
    %1486 = vmatprep.subr.bf16.mxu0 0
    %1487 = vmatpush2.bf16.msra.mxu0 0
    %1488 = vmatprep.mubr.bf16.mxu0 0
    %1489 = vmatmul.mubr.bf16.gmra.mxu0 %v1445
    %v1490 = vpop.f32.mrf.mxu0
    %v1491 = vadd.f32 0.0, %v1490
    %v1492 = vpop.f32.mrf.mxu0
    %v1493 = vpop.f32.mrf.mxu0
    %v1494 = vadd.f32 0.0, %v1493
    %v1495 = vpop.f32.mrf.mxu0
    %1496 = vmatprep.mubr.bf16.mxu0 0
    %1497 = vmatmul.mubr.bf16.gmra.mxu0 %v1448
    %v1498 = vpop.f32.mrf.mxu0
    %v1499 = vadd.f32 0.0, %v1498
    %v1500 = vpop.f32.mrf.mxu0
    %v1501 = vpop.f32.mrf.mxu0
    %v1502 = vadd.f32 0.0, %v1501
    %v1503 = vpop.f32.mrf.mxu0
    %1504 = vmatprep.mubr.bf16.mxu0 0
    %1505 = vmatmul.mubr.bf16.gmra.mxu0 %v1451
    %v1506 = vpop.f32.mrf.mxu0
    %v1507 = vadd.f32 0.0, %v1506
    %v1508 = vpop.f32.mrf.mxu0
    %v1509 = vpop.f32.mrf.mxu0
    %v1510 = vadd.f32 0.0, %v1509
    %v1511 = vpop.f32.mrf.mxu0
    %1512 = vmatprep.mubr.bf16.mxu0 0
    %1513 = vmatmul.mubr.bf16.gmra.mxu0 %v1454
    %v1514 = vpop.f32.mrf.mxu0
    %v1515 = vadd.f32 0.0, %v1514
    %v1516 = vpop.f32.mrf.mxu0
    %v1517 = vpop.f32.mrf.mxu0
    %v1518 = vadd.f32 0.0, %v1517
    %v1519 = vpop.f32.mrf.mxu0
    %1520 = vdwg.mxu0
    %v1522 = vsel %vm871, %v1384, 0
    %v1525 = vsel %vm871, %v1385, 0
    %v1528 = vsel %vm871, %v1386, 0
    %v1531 = vsel %vm871, %v1387, 0
    %1533 = vmatprep.subr.bf16.mxu0 0
    %1534 = vmatpush1.bf16.msra.mxu0 0
    %1535 = vmatprep.subr.bf16.mxu0 0
    %1536 = vmatpush1.bf16.msra.mxu0 0
    %1537 = vmatprep.subr.bf16.mxu0 0
    %1538 = vmatpush1.bf16.msra.mxu0 %v1413
    %1539 = vmatprep.subr.bf16.mxu0 0
    %1540 = vmatpush1.bf16.msra.mxu0 %v1412
    %1541 = vmatprep.subr.bf16.mxu0 0
    %1542 = vmatpush1.bf16.msra.mxu0 %v1411
    %1543 = vmatprep.subr.bf16.mxu0 0
    %1544 = vmatpush1.bf16.msra.mxu0 %v1410
    %1545 = vmatprep.subr.bf16.mxu0 0
    %1546 = vmatpush1.bf16.msra.mxu0 %v1409
    %1547 = vmatprep.subr.bf16.mxu0 0
    %1548 = vmatpush1.bf16.msra.mxu0 %v1408
    %1549 = vmatprep.subr.bf16.mxu0 0
    %1550 = vmatpush2.bf16.msra.mxu0 0
    %1551 = vmatprep.subr.bf16.mxu0 0
    %1552 = vmatpush2.bf16.msra.mxu0 0
    %1553 = vmatprep.subr.bf16.mxu0 0
    %1554 = vmatpush2.bf16.msra.mxu0 0
    %1555 = vmatprep.subr.bf16.mxu0 0
    %1556 = vmatpush2.bf16.msra.mxu0 0
    %1557 = vmatprep.subr.bf16.mxu0 0
    %1558 = vmatpush2.bf16.msra.mxu0 0
    %1559 = vmatprep.subr.bf16.mxu0 0
    %1560 = vmatpush2.bf16.msra.mxu0 0
    %1561 = vmatprep.subr.bf16.mxu0 0
    %1562 = vmatpush2.bf16.msra.mxu0 0
    %1563 = vmatprep.subr.bf16.mxu0 0
    %1564 = vmatpush2.bf16.msra.mxu0 0
    %1565 = vmatprep.mubr.bf16.mxu0 0
    %1566 = vmatmul.mubr.bf16.gmra.mxu0 %v1522
    %v1567 = vpop.f32.mrf.mxu0
    %v1568 = vadd.f32 %v1491, %v1567
    %v1569 = vpop.f32.mrf.mxu0
    %v1570 = vpop.f32.mrf.mxu0
    %v1571 = vadd.f32 %v1494, %v1570
    %v1572 = vpop.f32.mrf.mxu0
    %1573 = vmatprep.mubr.bf16.mxu0 0
    %1574 = vmatmul.mubr.bf16.gmra.mxu0 %v1525
    %v1575 = vpop.f32.mrf.mxu0
    %v1576 = vadd.f32 %v1499, %v1575
    %v1577 = vpop.f32.mrf.mxu0
    %v1578 = vpop.f32.mrf.mxu0
    %v1579 = vadd.f32 %v1502, %v1578
    %v1580 = vpop.f32.mrf.mxu0
    %1581 = vmatprep.mubr.bf16.mxu0 0
    %1582 = vmatmul.mubr.bf16.gmra.mxu0 %v1528
    %v1583 = vpop.f32.mrf.mxu0
    %v1584 = vadd.f32 %v1507, %v1583
    %v1585 = vpop.f32.mrf.mxu0
    %v1586 = vpop.f32.mrf.mxu0
    %v1587 = vadd.f32 %v1510, %v1586
    %v1588 = vpop.f32.mrf.mxu0
    %1589 = vmatprep.mubr.bf16.mxu0 0
    %1590 = vmatmul.mubr.bf16.gmra.mxu0 %v1531
    %v1591 = vpop.f32.mrf.mxu0
    %v1592 = vadd.f32 %v1515, %v1591
    %v1593 = vpop.f32.mrf.mxu0
    %v1594 = vpop.f32.mrf.mxu0
    %v1595 = vadd.f32 %v1518, %v1594
    %v1596 = vpop.f32.mrf.mxu0
    %1597 = vdwg.mxu0
    %1598 = vmatprep.subr.bf16.mxu0 0
    %1599 = vmatpush1.bf16.msra.mxu0 0
    %1600 = vmatprep.subr.bf16.mxu0 0
    %1601 = vmatpush1.bf16.msra.mxu0 0
    %1602 = vmatprep.subr.bf16.mxu0 0
    %1603 = vmatpush1.bf16.msra.mxu0 %v1443
    %1604 = vmatprep.subr.bf16.mxu0 0
    %1605 = vmatpush1.bf16.msra.mxu0 %v1442
    %1606 = vmatprep.subr.bf16.mxu0 0
    %1607 = vmatpush1.bf16.msra.mxu0 %v1441
    %1608 = vmatprep.subr.bf16.mxu0 0
    %1609 = vmatpush1.bf16.msra.mxu0 %v1440
    %1610 = vmatprep.subr.bf16.mxu0 0
    %1611 = vmatpush1.bf16.msra.mxu0 %v1439
    %1612 = vmatprep.subr.bf16.mxu0 0
    %1613 = vmatpush1.bf16.msra.mxu0 %v1438
    %1614 = vmatprep.subr.bf16.mxu0 0
    %1615 = vmatpush2.bf16.msra.mxu0 0
    %1616 = vmatprep.subr.bf16.mxu0 0
    %1617 = vmatpush2.bf16.msra.mxu0 0
    %1618 = vmatprep.subr.bf16.mxu0 0
    %1619 = vmatpush2.bf16.msra.mxu0 0
    %1620 = vmatprep.subr.bf16.mxu0 0
    %1621 = vmatpush2.bf16.msra.mxu0 0
    %1622 = vmatprep.subr.bf16.mxu0 0
    %1623 = vmatpush2.bf16.msra.mxu0 0
    %1624 = vmatprep.subr.bf16.mxu0 0
    %1625 = vmatpush2.bf16.msra.mxu0 0
    %1626 = vmatprep.subr.bf16.mxu0 0
    %1627 = vmatpush2.bf16.msra.mxu0 0
    %1628 = vmatprep.subr.bf16.mxu0 0
    %1629 = vmatpush2.bf16.msra.mxu0 0
    %1630 = vmatprep.mubr.bf16.mxu0 0
    %1631 = vmatmul.mubr.bf16.gmra.mxu0 %v1522
    %v1632 = vpop.f32.mrf.mxu0
    %v1633 = vadd.f32 0.0, %v1632
    %v1634 = vpop.f32.mrf.mxu0
    %v1635 = vpop.f32.mrf.mxu0
    %v1636 = vadd.f32 0.0, %v1635
    %v1637 = vpop.f32.mrf.mxu0
    %1638 = vmatprep.mubr.bf16.mxu0 0
    %1639 = vmatmul.mubr.bf16.gmra.mxu0 %v1525
    %v1640 = vpop.f32.mrf.mxu0
    %v1641 = vadd.f32 0.0, %v1640
    %v1642 = vpop.f32.mrf.mxu0
    %v1643 = vpop.f32.mrf.mxu0
    %v1644 = vadd.f32 0.0, %v1643
    %v1645 = vpop.f32.mrf.mxu0
    %1646 = vmatprep.mubr.bf16.mxu0 0
    %1647 = vmatmul.mubr.bf16.gmra.mxu0 %v1528
    %v1648 = vpop.f32.mrf.mxu0
    %v1649 = vadd.f32 0.0, %v1648
    %v1650 = vpop.f32.mrf.mxu0
    %v1651 = vpop.f32.mrf.mxu0
    %v1652 = vadd.f32 0.0, %v1651
    %v1653 = vpop.f32.mrf.mxu0
    %1654 = vmatprep.mubr.bf16.mxu0 0
    %1655 = vmatmul.mubr.bf16.gmra.mxu0 %v1531
    %v1656 = vpop.f32.mrf.mxu0
    %v1657 = vadd.f32 0.0, %v1656
    %v1658 = vpop.f32.mrf.mxu0
    %v1659 = vpop.f32.mrf.mxu0
    %v1660 = vadd.f32 0.0, %v1659
    %v1661 = vpop.f32.mrf.mxu0
    %1662 = vdwg.mxu0
    %v1663 = vadd.f32 %v1568, %v1633
    %v1664 = vadd.f32 %v1571, %v1636
    %v1665 = vadd.f32 %v1576, %v1641
    %v1666 = vadd.f32 %v1579, %v1644
    %v1667 = vadd.f32 %v1584, %v1649
    %v1668 = vadd.f32 %v1587, %v1652
    %v1669 = vadd.f32 %v1592, %v1657
    %v1670 = vadd.f32 %v1595, %v1660
    %v1671 = vld [vmem:[%s6] sm:$0x7]
    %v1672 = vlaneseq
    %v1673 = vshrl.u32 %v1672, 7
    %v1674 = vsub.s32 0, %v1673
    %v1675 = vrot.slane %v1671, %v1674
    %v1676 = vadd.f32 %v1663, %v1675
    %v1677 = vadd.f32 %v1664, %v1675
    %v1678 = vadd.f32 %v1665, %v1675
    %v1679 = vadd.f32 %v1666, %v1675
    %v1680 = vadd.f32 %v1667, %v1675
    %v1681 = vadd.f32 %v1668, %v1675
    %v1682 = vadd.f32 %v1669, %v1675
    %v1683 = vadd.f32 %v1670, %v1675
    %v1684 = vmax.f32 %v1676, 0.0
    %v1685 = vmax.f32 %v1677, 0.0
    %v1686 = vmax.f32 %v1678, 0.0
    %v1687 = vmax.f32 %v1679, 0.0
    %v1688 = vmax.f32 %v1680, 0.0
    %v1689 = vmax.f32 %v1681, 0.0
    %v1690 = vmax.f32 %v1682, 0.0
    %v1691 = vmax.f32 %v1683, 0.0
    %vm1692 = vcmp.lt.s32.totalorder %v536, 26
    %vm1693 = vcmp.lt.s32.totalorder %v537, 26
    %vm1694 = vcmp.lt.s32.totalorder %v538, 26
    %vm1695 = vcmp.lt.s32.totalorder %v539, 26
    %vm1696 = vcmp.lt.s32.totalorder %v540, 26
    %vm1697 = vcmp.lt.s32.totalorder %v541, 26
    %vm1698 = vcmp.lt.s32.totalorder %v542, 26
    %vm1699 = vcmp.lt.s32.totalorder %v543, 26
    %v1700 = vsel %vm1692, 1, 0
    %v1701 = vsel %vm1693, 1, 0
    %v1702 = vsel %vm1694, 1, 0
    %v1703 = vsel %vm1695, 1, 0
    %v1704 = vsel %vm1696, 1, 0
    %v1705 = vsel %vm1697, 1, 0
    %v1706 = vsel %vm1698, 1, 0
    %v1707 = vsel %vm1699, 1, 0
    %vm1708 = vcmp.eq.s32.totalorder %v1700, 1
    %vm1709 = vcmp.eq.s32.totalorder %v1701, 1
    %vm1710 = vcmp.eq.s32.totalorder %v1702, 1
    %vm1711 = vcmp.eq.s32.totalorder %v1703, 1
    %vm1712 = vcmp.eq.s32.totalorder %v1704, 1
    %vm1713 = vcmp.eq.s32.totalorder %v1705, 1
    %vm1714 = vcmp.eq.s32.totalorder %v1706, 1
    %vm1715 = vcmp.eq.s32.totalorder %v1707, 1
    %v1716 = vsel %vm1708, %v1684, 0.0
    %v1717 = vsel %vm1709, %v1685, 0.0
    %v1718 = vsel %vm1710, %v1686, 0.0
    %v1719 = vsel %vm1711, %v1687, 0.0
    %v1720 = vsel %vm1712, %v1688, 0.0
    %v1721 = vsel %vm1713, %v1689, 0.0
    %v1722 = vsel %vm1714, %v1690, 0.0
    %v1723 = vsel %vm1715, %v1691, 0.0
    %v1724 = vsel %vm790, %v1716, 0.0
    %v1725 = vsel %vm790, %v1717, 0.0
    %v1726 = vadd.f32 %v1724, %v1725
    %v1727 = vsel %vm790, %v1718, 0.0
    %v1728 = vadd.f32 %v1726, %v1727
    %v1729 = vsel %vm790, %v1719, 0.0
    %v1730 = vadd.f32 %v1728, %v1729
    %v1731 = vsel %vm790, %v1720, 0.0
    %v1732 = vadd.f32 %v1730, %v1731
    %v1733 = vsel %vm790, %v1721, 0.0
    %v1734 = vadd.f32 %v1732, %v1733
    %v1735 = vsel %vm790, %v1722, 0.0
    %v1736 = vadd.f32 %v1734, %v1735
    %vm1737 = vcmask 521216
    %v1738 = vsel %vm1737, %v1723, 0.0
    %v1739 = vadd.f32 %v1736, %v1738
    %v1740 = vrot.slane %v1739, 4
    %v1741 = vadd.f32 %v1739, %v1740
    %v1742 = vrot.slane %v1741, 2
    %v1743 = vadd.f32 %v1741, %v1742
    %v1744 = vrot.slane %v1743, 1
    %v1745 = vadd.f32 %v1743, %v1744
    %v1746 = vrcp.pop 52.0
    %v1747 = vmul.f32 %v1745, %v1746
    %v1748 = vsub.f32 %v1684, %v1747
    %v1749 = vsub.f32 %v1685, %v1747
    %v1750 = vsub.f32 %v1686, %v1747
    %v1751 = vsub.f32 %v1687, %v1747
    %v1752 = vsub.f32 %v1688, %v1747
    %v1753 = vsub.f32 %v1689, %v1747
    %v1754 = vsub.f32 %v1690, %v1747
    %v1755 = vsub.f32 %v1691, %v1747
    %v1756 = vsel %vm1708, %v1748, 0.0
    %v1757 = vsel %vm1709, %v1749, 0.0
    %v1758 = vsel %vm1710, %v1750, 0.0
    %v1759 = vsel %vm1711, %v1751, 0.0
    %v1760 = vsel %vm1712, %v1752, 0.0
    %v1761 = vsel %vm1713, %v1753, 0.0
    %v1762 = vsel %vm1714, %v1754, 0.0
    %v1763 = vsel %vm1715, %v1755, 0.0
    %v1764 = vmul.f32 %v1756, %v1756
    %v1765 = vmul.f32 %v1757, %v1757
    %v1766 = vmul.f32 %v1758, %v1758
    %v1767 = vmul.f32 %v1759, %v1759
    %v1768 = vmul.f32 %v1760, %v1760
    %v1769 = vmul.f32 %v1761, %v1761
    %v1770 = vmul.f32 %v1762, %v1762
    %v1771 = vmul.f32 %v1763, %v1763
    %v1772 = vsel %vm790, %v1764, 0.0
    %v1773 = vsel %vm790, %v1765, 0.0
    %v1774 = vadd.f32 %v1772, %v1773
    %v1775 = vsel %vm790, %v1766, 0.0
    %v1776 = vadd.f32 %v1774, %v1775
    %v1777 = vsel %vm790, %v1767, 0.0
    %v1778 = vadd.f32 %v1776, %v1777
    %v1779 = vsel %vm790, %v1768, 0.0
    %v1780 = vadd.f32 %v1778, %v1779
    %v1781 = vsel %vm790, %v1769, 0.0
    %v1782 = vadd.f32 %v1780, %v1781
    %v1783 = vsel %vm790, %v1770, 0.0
    %v1784 = vadd.f32 %v1782, %v1783
    %v1785 = vsel %vm1737, %v1771, 0.0
    %v1786 = vadd.f32 %v1784, %v1785
    %v1787 = vrot.slane %v1786, 4
    %v1788 = vadd.f32 %v1786, %v1787
    %v1789 = vrot.slane %v1788, 2
    %v1790 = vadd.f32 %v1788, %v1789
    %v1791 = vrot.slane %v1790, 1
    %v1792 = vadd.f32 %v1790, %v1791
    %v1793 = vmul.f32 %v1792, %v1746
    %v1794 = vadd.f32 %v1793, 1e-05
    %v1795 = vrsqrt.pop %v1794
    %v1796 = vmul.f32 %v1671, %v1795
    %v1797 = vmul.f32 %v1747, %v1796
    %v1799 = vrot.slane %v1797, 7
    %v1801 = vsub.f32 %v1671, %v1799
    %v1802 = vlaneseq
    %v1803 = vshrl.u32 %v1802, 7
    %v1804 = vsub.s32 1, %v1803
    %v1805 = vrot.slane %v1796, %v1804
    %v1806 = vmul.f32 %v1684, %v1805
    %v1807 = vmul.f32 %v1685, %v1805
    %v1808 = vmul.f32 %v1686, %v1805
    %v1809 = vmul.f32 %v1687, %v1805
    %v1810 = vmul.f32 %v1688, %v1805
    %v1811 = vmul.f32 %v1689, %v1805
    %v1812 = vmul.f32 %v1690, %v1805
    %v1813 = vmul.f32 %v1691, %v1805
    %v1814 = vlaneseq
    %v1815 = vshrl.u32 %v1814, 7
    %v1816 = vsub.s32 2, %v1815
    %v1817 = vrot.slane %v1801, %v1816
    %v1818 = vadd.f32 %v1806, %v1817
    %v1819 = vadd.f32 %v1807, %v1817
    %v1820 = vadd.f32 %v1808, %v1817
    %v1821 = vadd.f32 %v1809, %v1817
    %v1822 = vadd.f32 %v1810, %v1817
    %v1823 = vadd.f32 %v1811, %v1817
    %v1824 = vadd.f32 %v1812, %v1817
    %v1825 = vadd.f32 %v1813, %v1817
    %1826 = vst.msk [vmem:[#allocation4] sm:$0xff] %vm790, %v1818
    %1827 = vst.msk [vmem:[#allocation4 + $0x8] sm:$0xff] %vm790, %v1819
    %1828 = vst.msk [vmem:[#allocation4 + $0x10] sm:$0xff] %vm790, %v1820
    %1829 = vst.msk [vmem:[#allocation4 + $0x18] sm:$0xff] %vm790, %v1821
    %1830 = vst.msk [vmem:[#allocation4 + $0x20] sm:$0xff] %vm790, %v1822
    %1831 = vst.msk [vmem:[#allocation4 + $0x28] sm:$0xff] %vm790, %v1823
    %1832 = vst.msk [vmem:[#allocation4 + $0x30] sm:$0xff] %vm790, %v1824
    %1833 = vst.msk [vmem:[#allocation4 + $0x38] sm:$0x3f] %vm1737, %v1825
    %vm1834 = vcmask 517120
    %1835 = vst.msk [vmem:[#allocation4 + $0x3e] sm:$0x3] %vm1834, 0.0
    // Predicated region
    $region30: #{tpu_custom_call.1} parent=1 // pred_check
      _
    $region31: #{tpu_custom_call.1} parent=1 // pred_check_branch
      %1837 = sbr.rel (0) target = $region33
    $region32: #{tpu_custom_call.1} parent=1 // pred_region
      %s1839 = ssub.s32 1024, 1024
      %1840 = vsyncadd [#allocation5], %s1839
      %s1841 = sshll.u32 [#allocation4], 4
      %s1842 = int_to_ptr.vmem [resolvable:$true] %s1841
      %1847 = dma.vmem_to_hbm [thread:$0]  %s1842, 1024, %s7, [#allocation5], 128, 128, 8
    $region33: #{tpu_custom_call.1} parent=1 // pred_fallthru
      _
    // Predicated region
    $region34: #{tpu_custom_call.1} parent=1 // pred_check
      _
    $region35: #{tpu_custom_call.1} parent=1 // pred_check_branch
      %1849 = sbr.rel (0) target = $region37
    $region36: #{tpu_custom_call.1} parent=1 // pred_region
      %1850 = dma.done [#allocation5], 1024
    $region37: #{tpu_custom_call.1} parent=1 // pred_fallthru
      _
    %1851 = vsyncpa [#allocation5], 1

</llo_original>
